<compile_context>
chip_gen: v7x
topology: tpu7x:2x2x1
jax: 0.10.0
libtpu: 0.0.40
codegen_flags: <defaults>
</compile_context>

<pallas_src>
import functools

import jax
import jax.numpy as jnp
from jax.experimental import pallas as pl
from jax.experimental.pallas import tpu as pltpu


# ---------------------------------------------------------------------------
# Pallas kernel: fused encoder+decoder MLP over one pixel tile.
# ---------------------------------------------------------------------------
def featcae_kernel(x_ref,
                   w1, b1, w2, b2, w34, b34, w5, b5, w6, b6,
                   o_ref, *, weight_stationary):
    # x_ref block: (C_in, TILE_P) f32 (batch dim squeezed away by the BlockSpec).
    if weight_stationary:
        # Pixels stream as MXU LHS rows; the (cin, cout) bf16 weight is the
        # stationary RHS (one stationary load per layer per tile).  Biases are
        # (1, cout) f32.  The two transposes ride the XLU and overlap the MXU.
        h = jnp.transpose(x_ref[...]).astype(jnp.bfloat16)          # (TILE_P, C_in)
        mm = lambda a, w_ref: jnp.dot(a, w_ref[...],
                                      preferred_element_type=jnp.float32)
    else:
        # Classic (C, TILE_P) orientation (kept for v5e: HBM-bound regime).
        # Weights are (cout, cin) bf16, biases (cout, 1) f32.
        h = x_ref[...].astype(jnp.bfloat16)                          # (C_in, TILE_P)
        mm = lambda a, w_ref: jnp.dot(w_ref[...], a,
                                      preferred_element_type=jnp.float32)

    def layer_relu(a_bf16, w_ref, b_ref):
        y = jnp.maximum(mm(a_bf16, w_ref) + b_ref[...], 0.0)        # bias + ReLU in f32
        return y.astype(jnp.bfloat16)                                # bf16 feed for next MXU pass

    h = layer_relu(h, w1, b1)        # conv1 + BN + ReLU
    h = layer_relu(h, w2, b2)        # conv2 + BN + ReLU
    h = layer_relu(h, w34, b34)      # conv3 (linear) folded with conv4 + BN, then ReLU
    h = layer_relu(h, w5, b5)        # conv5 + BN + ReLU
    y = mm(h, w6) + b6[...]          # conv6 (no activation)

    if weight_stationary:
        y = jnp.transpose(y)         # back to (C_out, TILE_P): lane-dense store
    o_ref[...] = y.astype(o_ref.dtype)


# ---------------------------------------------------------------------------
# Parameter construction (deterministic, synthetic) + BN folding (eval mode,
# init running stats: mean=0, var=1, gamma=1, beta=0).
# Each layer is stored in "row" form: h_row @ w + b  with w: (cin, cout).
# ---------------------------------------------------------------------------
def make_params(key, in_channels, latent_dim, is_bn=True, eps=1e-5):
    h1 = (in_channels + 2 * latent_dim) // 2
    dims = [in_channels, h1, 2 * latent_dim, latent_dim,
            2 * latent_dim, h1, in_channels]
    has_bn = [is_bn, is_bn, False, is_bn, is_bn, False]

    params = []
    keys = jax.random.split(key, len(dims) - 1)
    for li in range(len(dims) - 1):
        cin, cout = dims[li], dims[li + 1]
        kw, kb = jax.random.split(keys[li])
        # Conv2d(cin, cout, 1): weight (cout, cin, 1, 1) -> matmul form (cin, cout)
        w = (jax.random.normal(kw, (cin, cout), jnp.float32)
             / jnp.sqrt(jnp.float32(cin)))
        b = jax.random.normal(kb, (cout,), jnp.float32) * 0.01
        if has_bn[li]:
            gamma = jnp.ones((cout,), jnp.float32)
            beta = jnp.zeros((cout,), jnp.float32)
            run_mean = jnp.zeros((cout,), jnp.float32)
            run_var = jnp.ones((cout,), jnp.float32)
            scale = gamma / jnp.sqrt(run_var + eps)
            shift = beta - run_mean * scale
            w = w * scale[None, :]
            b = b * scale + shift
        params.append((w, b))
    return params


# ---------------------------------------------------------------------------
# Tiling / VMEM helpers.
# ---------------------------------------------------------------------------
def _pick_pixel_tile(hw_pad, want, min_steps=1):
    """Largest 128-multiple divisor of hw_pad (itself a multiple of 128) that is
    <= want and leaves at least `min_steps` grid steps along the pixel axis."""
    cap = min(want, hw_pad)
    if min_steps > 1 and hw_pad // min_steps >= 128:
        cap = min(cap, hw_pad // min_steps)
    t = max((cap // 128) * 128, 128)
    while t > 128 and hw_pad % t != 0:
        t -= 128
    return t


def _vmem_budget(dims, tp, in_itemsize, out_itemsize):
    c_in, c_out, c_max = dims[0], dims[-1], max(dims)
    blocks = 2 * tp * (c_in * in_itemsize + c_out * out_itemsize)   # double-buffered in/out
    acts = 6 * tp * c_max * 4                                       # live f32/bf16 intermediates
    weights = 4 * sum(a * b + b for a, b in zip(dims[:-1], dims[1:]))
    est = blocks + acts + weights + (8 << 20)                       # generous headroom
    # Never below the 32 MiB default; cap at 48 MiB so v7x (64 MiB physical) is safe.
    return int(min(max(est, 32 << 20), 48 << 20))


def _const_spec(arr):
    nd = arr.ndim
    return pl.BlockSpec(arr.shape, lambda n, i: (0,) * nd)


# ---------------------------------------------------------------------------
# Wrapper: (N, C, H*W) tiling, BN-folded weight fusion, pallas_call.
# ---------------------------------------------------------------------------
@functools.partial(jax.jit,
                   static_argnames=("tile_p", "out_dtype", "weight_stationary"))
def featcae_forward(x_nchw, params, tile_p=4096, out_dtype=None,
                    weight_stationary=True):
    N, C, H, W = x_nchw.shape
    HW = H * W
    out_dtype = x_nchw.dtype if out_dtype is None else jnp.dtype(out_dtype)

    # NCHW viewed as (N, C, H*W): pure reshape, no transpose / extra HBM pass.
    x3 = x_nchw.reshape(N, C, HW)

    # Pad the pixel axis to a multiple of 128 so every tile is lane-dense and
    # pipelined (pixels are independent, so zero-padding is exact; the pad is
    # sliced off after the kernel).
    hw_pad = ((HW + 127) // 128) * 128
    if hw_pad != HW:
        x3 = jnp.pad(x3, ((0, 0), (0, 0), (0, hw_pad - HW)))

    # For single-image inference keep >= 2 pixel-axis steps so both v7x
    # TensorCores get work; otherwise use the biggest tile that divides hw_pad.
    min_steps = 2 if N == 1 else 1
    tp = _pick_pixel_tile(hw_pad, tile_p, min_steps)

    # Fold the linear bottleneck pair (row form, w: (cin, cout)):
    #   conv4(conv3(h)) == h @ (W3 @ W4) + (b3 @ W4 + b4)
    (w1, b1), (w2, b2), (w3, b3), (w4, b4), (w5, b5), (w6, b6) = params
    w34 = w3 @ w4
    b34 = b3 @ w4 + b4

    if weight_stationary:
        pack = lambda w, b: (w.astype(jnp.bfloat16),
                             b.reshape(1, -1).astype(jnp.float32))
    else:
        pack = lambda w, b: (w.T.astype(jnp.bfloat16),
                             b.reshape(-1, 1).astype(jnp.float32))

    flat = []
    for w, b in [(w1, b1), (w2, b2), (w34, b34), (w5, b5), (w6, b6)]:
        flat += list(pack(w, b))

    c_out = w6.shape[1]
    dims = [C, w1.shape[1], w2.shape[1], w34.shape[1], w5.shape[1], c_out]
    vmem_limit = _vmem_budget(dims, tp, x_nchw.dtype.itemsize,
                              jnp.dtype(out_dtype).itemsize)

    # Constant-index-map specs keep the (tiny) weights resident across grid steps.
    # TODO(synk): for realistic DFR channel counts (1-2K) on v7x, consider
    # pipeline_mode=pl.Buffered(1) on these constant specs to drop the second buffer.
    in_specs = [pl.BlockSpec((pl.Squeezed(), C, tp), lambda n, i: (n, 0, i))]
    in_specs += [_const_spec(a) for a in flat]
    out_specs = pl.BlockSpec((pl.Squeezed(), c_out, tp), lambda n, i: (n, 0, i))

    kernel = functools.partial(featcae_kernel,
                               weight_stationary=weight_stationary)

    out = pl.pallas_call(
        kernel,
        out_shape=jax.ShapeDtypeStruct((N, c_out, hw_pad), out_dtype),
        grid_spec=pltpu.PrefetchScalarGridSpec(
            num_scalar_prefetch=0,
            grid=(N, hw_pad // tp),
            in_specs=in_specs,
            out_specs=out_specs,
        ),
        compiler_params=pltpu.CompilerParams(
            dimension_semantics=("parallel", "parallel"),
            vmem_limit_bytes=vmem_limit),
    )(x3, *flat)

    if hw_pad != HW:
        out = out[:, :, :HW]
    return out.reshape(N, c_out, H, W)


# ---------------------------------------------------------------------------
# Pure-JAX f32 reference (unfused, per-layer) for a correctness spot-check.
# ---------------------------------------------------------------------------
def featcae_reference(x_nchw, params):
    N, C, H, W = x_nchw.shape
    h = jnp.transpose(x_nchw, (0, 2, 3, 1)).reshape(N * H * W, C)
    n_layers = len(params)
    for li, (w, b) in enumerate(params):
        h = h @ w + b
        if li not in (2, n_layers - 1):   # ReLU after all but the two "bare" convs
            h = jnp.maximum(h, 0.0)
    c_out = params[-1][0].shape[1]
    return jnp.transpose(h.reshape(N, H, W, c_out), (0, 3, 1, 2))


if __name__ == "__main__":
    # Small shapes consistent with FeatCAE(in_channels, latent_dim):
    #   in_channels=64, latent_dim=8 -> hidden=(64+16)//2=40, bottleneck=8
    IN_CHANNELS = 64
    LATENT_DIM = 8
    N, H, W = 2, 16, 16      # x: (2, 64, 16, 16) NCHW; 256 pixels/image -> lane-dense tiles

    key = jax.random.PRNGKey(0)
    kx, kp = jax.random.split(key)
    x = jax.random.normal(kx, (N, IN_CHANNELS, H, W), jnp.float32)
    params = make_params(kp, IN_CHANNELS, LATENT_DIM, is_bn=True)

    y = featcae_forward(x, params)
    y = jax.block_until_ready(y)

    y_ref = featcae_reference(x, params)
    assert y.shape == (N, IN_CHANNELS, H, W)

    # bf16 MXU operands -> compare with a relative (to output scale) tolerance.
    err = float(jnp.max(jnp.abs(y - y_ref)))
    scale = float(jnp.max(jnp.abs(y_ref))) + 1e-6
    assert err / scale < 5e-2, f"mismatch vs reference: rel max err {err / scale:.3e}"

    print("KERNEL_OK")
</pallas_src>

<mosaic_0001>
module attributes {stable_mosaic.version = 11 : i64} {
  func.func @featcae_kernel(%arg0: i32, %arg1: i32, %arg2: memref<1x64x256xf32, #tpu.memory_space<vmem>>, %arg3: memref<64x40xbf16, #tpu.memory_space<vmem>>, %arg4: memref<1x40xf32, #tpu.memory_space<vmem>>, %arg5: memref<40x16xbf16, #tpu.memory_space<vmem>>, %arg6: memref<1x16xf32, #tpu.memory_space<vmem>>, %arg7: memref<16x16xbf16, #tpu.memory_space<vmem>>, %arg8: memref<1x16xf32, #tpu.memory_space<vmem>>, %arg9: memref<16x40xbf16, #tpu.memory_space<vmem>>, %arg10: memref<1x40xf32, #tpu.memory_space<vmem>>, %arg11: memref<40x64xbf16, #tpu.memory_space<vmem>>, %arg12: memref<1x64xf32, #tpu.memory_space<vmem>>, %arg13: memref<1x64x256xf32, #tpu.memory_space<vmem>>) attributes {dimension_semantics = [#tpu.dimension_semantics<parallel>, #tpu.dimension_semantics<parallel>], iteration_bounds = array<i64: 2, 1>, scalar_prefetch = 0 : i64, scratch_operands = 0 : i64, tpu.core_type = #tpu.core_type<tc>, window_params = [{transform_indices = @transform_0, window_bounds = array<i64: 1, 64, 256>}, {pipeline_mode = #tpu.pipeline_mode<synchronous>, transform_indices = @transform_1, window_bounds = array<i64: 64, 40>}, {pipeline_mode = #tpu.pipeline_mode<synchronous>, transform_indices = @transform_2, window_bounds = array<i64: 1, 40>}, {pipeline_mode = #tpu.pipeline_mode<synchronous>, transform_indices = @transform_3, window_bounds = array<i64: 40, 16>}, {pipeline_mode = #tpu.pipeline_mode<synchronous>, transform_indices = @transform_4, window_bounds = array<i64: 1, 16>}, {pipeline_mode = #tpu.pipeline_mode<synchronous>, transform_indices = @transform_5, window_bounds = array<i64: 16, 16>}, {pipeline_mode = #tpu.pipeline_mode<synchronous>, transform_indices = @transform_6, window_bounds = array<i64: 1, 16>}, {pipeline_mode = #tpu.pipeline_mode<synchronous>, transform_indices = @transform_7, window_bounds = array<i64: 16, 40>}, {pipeline_mode = #tpu.pipeline_mode<synchronous>, transform_indices = @transform_8, window_bounds = array<i64: 1, 40>}, {pipeline_mode = #tpu.pipeline_mode<synchronous>, transform_indices = @transform_9, window_bounds = array<i64: 40, 64>}, {pipeline_mode = #tpu.pipeline_mode<synchronous>, transform_indices = @transform_10, window_bounds = array<i64: 1, 64>}, {transform_indices = @transform_11, window_bounds = array<i64: 1, 64, 256>}]} {
    %c0 = arith.constant 0 : index
    %c0_0 = arith.constant 0 : index
    %c0_1 = arith.constant 0 : index
    %0 = vector.load %arg2[%c0, %c0_0, %c0_1] : memref<1x64x256xf32, #tpu.memory_space<vmem>>, vector<1x64x256xf32>
    %1 = vector.shape_cast %0 : vector<1x64x256xf32> to vector<64x256xf32>
    %2 = tpu.transpose %1, [1, 0] : vector<64x256xf32> -> vector<256x64xf32>
    %3 = arith.truncf %2 : vector<256x64xf32> to vector<256x64xbf16>
    %c0_2 = arith.constant 0 : index
    %c0_3 = arith.constant 0 : index
    %4 = vector.load %arg3[%c0_2, %c0_3] : memref<64x40xbf16, #tpu.memory_space<vmem>>, vector<64x40xbf16>
    %cst = arith.constant dense<0.000000e+00> : vector<256x40xf32>
    %5 = tpu.matmul %3, %4, %cst {dimension_numbers = #tpu.dot_dimension_numbers<[1], [0], [0], [1], [0, 0, 1, 1], [], []>} : vector<256x64xbf16>, vector<64x40xbf16>, vector<256x40xf32> -> vector<256x40xf32>
    %c0_4 = arith.constant 0 : index
    %c0_5 = arith.constant 0 : index
    %6 = vector.load %arg4[%c0_4, %c0_5] : memref<1x40xf32, #tpu.memory_space<vmem>>, vector<1x40xf32>
    %7 = vector.broadcast %6 : vector<1x40xf32> to vector<256x40xf32>
    %8 = arith.addf %5, %7 : vector<256x40xf32>
    %cst_6 = arith.constant 0.000000e+00 : f32
    %9 = vector.broadcast %cst_6 : f32 to vector<256x40xf32>
    %10 = arith.maximumf %8, %9 : vector<256x40xf32>
    %11 = arith.truncf %10 : vector<256x40xf32> to vector<256x40xbf16>
    %c0_7 = arith.constant 0 : index
    %c0_8 = arith.constant 0 : index
    %12 = vector.load %arg5[%c0_7, %c0_8] : memref<40x16xbf16, #tpu.memory_space<vmem>>, vector<40x16xbf16>
    %cst_9 = arith.constant dense<0.000000e+00> : vector<256x16xf32>
    %13 = tpu.matmul %11, %12, %cst_9 {dimension_numbers = #tpu.dot_dimension_numbers<[1], [0], [0], [1], [0, 0, 1, 1], [], []>} : vector<256x40xbf16>, vector<40x16xbf16>, vector<256x16xf32> -> vector<256x16xf32>
    %c0_10 = arith.constant 0 : index
    %c0_11 = arith.constant 0 : index
    %14 = vector.load %arg6[%c0_10, %c0_11] : memref<1x16xf32, #tpu.memory_space<vmem>>, vector<1x16xf32>
    %15 = vector.broadcast %14 : vector<1x16xf32> to vector<256x16xf32>
    %16 = arith.addf %13, %15 : vector<256x16xf32>
    %cst_12 = arith.constant 0.000000e+00 : f32
    %17 = vector.broadcast %cst_12 : f32 to vector<256x16xf32>
    %18 = arith.maximumf %16, %17 : vector<256x16xf32>
    %19 = arith.truncf %18 : vector<256x16xf32> to vector<256x16xbf16>
    %c0_13 = arith.constant 0 : index
    %c0_14 = arith.constant 0 : index
    %20 = vector.load %arg7[%c0_13, %c0_14] : memref<16x16xbf16, #tpu.memory_space<vmem>>, vector<16x16xbf16>
    %cst_15 = arith.constant dense<0.000000e+00> : vector<256x16xf32>
    %21 = tpu.matmul %19, %20, %cst_15 {dimension_numbers = #tpu.dot_dimension_numbers<[1], [0], [0], [1], [0, 0, 1, 1], [], []>} : vector<256x16xbf16>, vector<16x16xbf16>, vector<256x16xf32> -> vector<256x16xf32>
    %c0_16 = arith.constant 0 : index
    %c0_17 = arith.constant 0 : index
    %22 = vector.load %arg8[%c0_16, %c0_17] : memref<1x16xf32, #tpu.memory_space<vmem>>, vector<1x16xf32>
    %23 = vector.broadcast %22 : vector<1x16xf32> to vector<256x16xf32>
    %24 = arith.addf %21, %23 : vector<256x16xf32>
    %cst_18 = arith.constant 0.000000e+00 : f32
    %25 = vector.broadcast %cst_18 : f32 to vector<256x16xf32>
    %26 = arith.maximumf %24, %25 : vector<256x16xf32>
    %27 = arith.truncf %26 : vector<256x16xf32> to vector<256x16xbf16>
    %c0_19 = arith.constant 0 : index
    %c0_20 = arith.constant 0 : index
    %28 = vector.load %arg9[%c0_19, %c0_20] : memref<16x40xbf16, #tpu.memory_space<vmem>>, vector<16x40xbf16>
    %cst_21 = arith.constant dense<0.000000e+00> : vector<256x40xf32>
    %29 = tpu.matmul %27, %28, %cst_21 {dimension_numbers = #tpu.dot_dimension_numbers<[1], [0], [0], [1], [0, 0, 1, 1], [], []>} : vector<256x16xbf16>, vector<16x40xbf16>, vector<256x40xf32> -> vector<256x40xf32>
    %c0_22 = arith.constant 0 : index
    %c0_23 = arith.constant 0 : index
    %30 = vector.load %arg10[%c0_22, %c0_23] : memref<1x40xf32, #tpu.memory_space<vmem>>, vector<1x40xf32>
    %31 = vector.broadcast %30 : vector<1x40xf32> to vector<256x40xf32>
    %32 = arith.addf %29, %31 : vector<256x40xf32>
    %cst_24 = arith.constant 0.000000e+00 : f32
    %33 = vector.broadcast %cst_24 : f32 to vector<256x40xf32>
    %34 = arith.maximumf %32, %33 : vector<256x40xf32>
    %35 = arith.truncf %34 : vector<256x40xf32> to vector<256x40xbf16>
    %c0_25 = arith.constant 0 : index
    %c0_26 = arith.constant 0 : index
    %36 = vector.load %arg11[%c0_25, %c0_26] : memref<40x64xbf16, #tpu.memory_space<vmem>>, vector<40x64xbf16>
    %cst_27 = arith.constant dense<0.000000e+00> : vector<256x64xf32>
    %37 = tpu.matmul %35, %36, %cst_27 {dimension_numbers = #tpu.dot_dimension_numbers<[1], [0], [0], [1], [0, 0, 1, 1], [], []>} : vector<256x40xbf16>, vector<40x64xbf16>, vector<256x64xf32> -> vector<256x64xf32>
    %c0_28 = arith.constant 0 : index
    %c0_29 = arith.constant 0 : index
    %38 = vector.load %arg12[%c0_28, %c0_29] : memref<1x64xf32, #tpu.memory_space<vmem>>, vector<1x64xf32>
    %39 = vector.broadcast %38 : vector<1x64xf32> to vector<256x64xf32>
    %40 = arith.addf %37, %39 : vector<256x64xf32>
    %41 = tpu.transpose %40, [1, 0] : vector<256x64xf32> -> vector<64x256xf32>
    %c0_30 = arith.constant 0 : index
    %c0_31 = arith.constant 0 : index
    %c0_32 = arith.constant 0 : index
    %42 = vector.load %arg13[%c0_30, %c0_31, %c0_32] : memref<1x64x256xf32, #tpu.memory_space<vmem>>, vector<1x64x256xf32>
    %43 = vector.shape_cast %42 : vector<1x64x256xf32> to vector<64x256xf32>
    %44 = vector.shape_cast %41 : vector<64x256xf32> to vector<1x64x256xf32>
    tpu.vector_store %arg13[%c0_30, %c0_31, %c0_32], %44 {strides = array<i32>} : memref<1x64x256xf32, #tpu.memory_space<vmem>>, vector<1x64x256xf32>,
    return
  }
  func.func @transform_0(%arg0: i32, %arg1: i32) -> (i32, i32, i32) {
    %c0_i32 = arith.constant 0 : i32
    %c0_i32_0 = arith.constant 0 : i32
    return %arg0, %c0_i32, %arg1 : i32, i32, i32
  }
  func.func @transform_1(%arg0: i32, %arg1: i32) -> (i32, i32) {
    %c0_i32 = arith.constant 0 : i32
    %c0_i32_0 = arith.constant 0 : i32
    %c0_i32_1 = arith.constant 0 : i32
    return %c0_i32, %c0_i32_0 : i32, i32
  }
  func.func @transform_2(%arg0: i32, %arg1: i32) -> (i32, i32) {
    %c0_i32 = arith.constant 0 : i32
    %c0_i32_0 = arith.constant 0 : i32
    %c0_i32_1 = arith.constant 0 : i32
    return %c0_i32, %c0_i32_0 : i32, i32
  }
  func.func @transform_3(%arg0: i32, %arg1: i32) -> (i32, i32) {
    %c0_i32 = arith.constant 0 : i32
    %c0_i32_0 = arith.constant 0 : i32
    %c0_i32_1 = arith.constant 0 : i32
    return %c0_i32, %c0_i32_0 : i32, i32
  }
  func.func @transform_4(%arg0: i32, %arg1: i32) -> (i32, i32) {
    %c0_i32 = arith.constant 0 : i32
    %c0_i32_0 = arith.constant 0 : i32
    %c0_i32_1 = arith.constant 0 : i32
    return %c0_i32, %c0_i32_0 : i32, i32
  }
  func.func @transform_5(%arg0: i32, %arg1: i32) -> (i32, i32) {
    %c0_i32 = arith.constant 0 : i32
    %c0_i32_0 = arith.constant 0 : i32
    %c0_i32_1 = arith.constant 0 : i32
    return %c0_i32, %c0_i32_0 : i32, i32
  }
  func.func @transform_6(%arg0: i32, %arg1: i32) -> (i32, i32) {
    %c0_i32 = arith.constant 0 : i32
    %c0_i32_0 = arith.constant 0 : i32
    %c0_i32_1 = arith.constant 0 : i32
    return %c0_i32, %c0_i32_0 : i32, i32
  }
  func.func @transform_7(%arg0: i32, %arg1: i32) -> (i32, i32) {
    %c0_i32 = arith.constant 0 : i32
    %c0_i32_0 = arith.constant 0 : i32
    %c0_i32_1 = arith.constant 0 : i32
    return %c0_i32, %c0_i32_0 : i32, i32
  }
  func.func @transform_8(%arg0: i32, %arg1: i32) -> (i32, i32) {
    %c0_i32 = arith.constant 0 : i32
    %c0_i32_0 = arith.constant 0 : i32
    %c0_i32_1 = arith.constant 0 : i32
    return %c0_i32, %c0_i32_0 : i32, i32
  }
  func.func @transform_9(%arg0: i32, %arg1: i32) -> (i32, i32) {
    %c0_i32 = arith.constant 0 : i32
    %c0_i32_0 = arith.constant 0 : i32
    %c0_i32_1 = arith.constant 0 : i32
    return %c0_i32, %c0_i32_0 : i32, i32
  }
  func.func @transform_10(%arg0: i32, %arg1: i32) -> (i32, i32) {
    %c0_i32 = arith.constant 0 : i32
    %c0_i32_0 = arith.constant 0 : i32
    %c0_i32_1 = arith.constant 0 : i32
    return %c0_i32, %c0_i32_0 : i32, i32
  }
  func.func @transform_11(%arg0: i32, %arg1: i32) -> (i32, i32, i32) {
    %c0_i32 = arith.constant 0 : i32
    %c0_i32_0 = arith.constant 0 : i32
    return %arg0, %c0_i32, %arg1 : i32, i32, i32
  }
}

</mosaic_0001>

<llo_original>
// kernel: featcae_forward.1
$region0: #{featcae_forward.1}
  #allocation0 [shape = 'u32[]', space=smem, size = 0x4, offset = 0x4, fixed_abs, tag = 'smem constant byte address 0x4 - core index']
  #allocation1 [shape = 'u32[144,128]{1,0:T(1,128)}', space=vmem, size = 0x12000, scoped, tag = 'internal scratch']
  %s0 = inlined_call_operand.vmem [shape: f32[2,64,256], index: 0, kind: input, shape index: {}]
  %s1 = inlined_call_operand.vmem [shape: bf16[64,40], index: 1, kind: input, shape index: {}]
  %s2 = inlined_call_operand.vmem [shape: f32[1,40], index: 2, kind: input, shape index: {}]
  %s3 = inlined_call_operand.vmem [shape: bf16[40,16], index: 3, kind: input, shape index: {}]
  %s4 = inlined_call_operand.vmem [shape: f32[1,16], index: 4, kind: input, shape index: {}]
  %s5 = inlined_call_operand.vmem [shape: bf16[16,16], index: 5, kind: input, shape index: {}]
  %s6 = inlined_call_operand.vmem [shape: f32[1,16], index: 6, kind: input, shape index: {}]
  %s7 = inlined_call_operand.vmem [shape: bf16[16,40], index: 7, kind: input, shape index: {}]
  %s8 = inlined_call_operand.vmem [shape: f32[1,40], index: 8, kind: input, shape index: {}]
  %s9 = inlined_call_operand.vmem [shape: bf16[40,64], index: 9, kind: input, shape index: {}]
  %s10 = inlined_call_operand.vmem [shape: f32[1,64], index: 10, kind: input, shape index: {}]
  %s11 = inlined_call_operand.vmem [shape: f32[2,64,256], index: 11, kind: output, shape index: {}]
  %s12 = sld [smem:[#allocation0]]
  $region77: #{featcae_forward.1} parent=0
    _
  %s14 = ssub.s32 1, %s12
  %s15 = scalar_select 0, %s14, %s12
  loop: start=0, step=1, limit=4
  $region2: #{featcae_forward.1} parent=0 // loop_pre_header
    _
  $region3: #{featcae_forward.1} parent=0 // loop_header
    %s17 = sphi 0, %s21
    %p18 = scmp.ge.s32.totalorder %s17, 4
    %s24 = sphi 0, %s36
    %s25 = sphi 0, %s32
    %s26 = sphi 0, %s24
    %s27 = sphi 0, %s25
    %s28 = sphi 0, %s26
    %s29 = sphi 0, %s27
    %s41 = sphi 0, %s43
    %s44 = sphi 0, %s41
    %s45 = sphi 0, %s44
    %s61 = sphi 0, %s45
    %s65 = sphi 0, %s65
    %s67 = sphi 0, %s65
    %s68 = sphi 0, %s67
    %s82 = sphi 0, %s68
    %s86 = sphi 0, %s86
    %s88 = sphi 0, %s86
    %s89 = sphi 0, %s88
    %s103 = sphi 0, %s89
    %s107 = sphi 0, %s107
    %s109 = sphi 0, %s107
    %s110 = sphi 0, %s109
    %s124 = sphi 0, %s110
    %s128 = sphi 0, %s128
    %s130 = sphi 0, %s128
    %s131 = sphi 0, %s130
    %s145 = sphi 0, %s131
    %s149 = sphi 0, %s149
    %s151 = sphi 0, %s149
    %s152 = sphi 0, %s151
    %s166 = sphi 0, %s152
    %s170 = sphi 0, %s170
    %s172 = sphi 0, %s170
    %s173 = sphi 0, %s172
    %s187 = sphi 0, %s173
    %s191 = sphi 0, %s191
    %s193 = sphi 0, %s191
    %s194 = sphi 0, %s193
    %s208 = sphi 0, %s194
    %s212 = sphi 0, %s212
    %s214 = sphi 0, %s212
    %s215 = sphi 0, %s214
    %s229 = sphi 0, %s215
    %s233 = sphi 0, %s233
    %s235 = sphi 0, %s233
    %s236 = sphi 0, %s235
    %s250 = sphi 0, %s236
    %s254 = sphi 0, %s254
    %s256 = sphi 0, %s254
    %s257 = sphi 0, %s256
    %s271 = sphi 0, %s257
    %s279 = sphi 0, %s281
    %s282 = sphi 0, %s279
    %s283 = sphi 0, %s282
    %s299 = sphi 0, %s283
  $region4: #{featcae_forward.1} parent=0 // loop_header_branch
    %20 = sbr.rel (%p18) target = $region8
  $region5: #{featcae_forward.1} parent=0 // loop_body
    %s22 = ssub.s32 %s17, 1
    %s23 = ssub.s32 %s17, 2
    %s30 = sadd.s32 1, %s25
    %p31 = scmp.ge.s32.totalorder %s30, 1
    %s32 = scalar_select %p31, 0, %s30
    %s33 = sadd.s32 1, %s24
    %s34 = scalar_select %p31, %s33, %s24
    %p35 = scmp.ge.s32.totalorder %s34, 2
    %s36 = scalar_select %p35, 0, %s34
    %s37 = ssub.s32 %s24, %s36
    %s38 = ssub.s32 %s25, %s32
    %s39 = sor.u32 %s37, %s38
    %p40 = scmp.eq.s32.totalorder %s39, 0
    %s42 = sadd.s32 %s41, 1
    %s43 = scalar_select %p40, %s41, %s42
    %p46 = pneg %p40
    %p47 = scmp.eq.s32.totalorder %s17, 1
    %p48 = por %p46, %p47
    %p49 = scmp.ne.s32.totalorder %s41, %s44
    %p50 = scmp.eq.s32.totalorder %s17, 0
    %p51 = por %p49, %p50
    %p52 = scmp.ne.s32.totalorder %s41, %s44
    %p53 = scmp.eq.s32.totalorder %s22, 1
    %p54 = por %p52, %p53
    %p55 = scmp.ne.s32.totalorder %s44, %s45
    %p56 = scmp.eq.s32.totalorder %s22, 0
    %p57 = por %p55, %p56
    %p58 = scmp.ne.s32.totalorder %s44, %s45
    %p59 = scmp.eq.s32.totalorder %s23, 1
    %p60 = por %p58, %p59
    %p62 = scmp.ne.s32.totalorder %s45, %s61
    %p63 = scmp.eq.s32.totalorder %s23, 0
    %p64 = por %p62, %p63
    %s66 = sadd.s32 %s65, 1
    %p69 = scmp.eq.s32.totalorder %s17, 1
    %p70 = scmp.ne.s32.totalorder %s65, %s67
    %p71 = scmp.eq.s32.totalorder %s17, 0
    %p72 = por %p70, %p71
    %p73 = scmp.ne.s32.totalorder %s65, %s67
    %p74 = scmp.eq.s32.totalorder %s22, 1
    %p75 = por %p73, %p74
    %p76 = scmp.ne.s32.totalorder %s67, %s68
    %p77 = scmp.eq.s32.totalorder %s22, 0
    %p78 = por %p76, %p77
    %p79 = scmp.ne.s32.totalorder %s67, %s68
    %p80 = scmp.eq.s32.totalorder %s23, 1
    %p81 = por %p79, %p80
    %p83 = scmp.ne.s32.totalorder %s68, %s82
    %p84 = scmp.eq.s32.totalorder %s23, 0
    %p85 = por %p83, %p84
    %s87 = sadd.s32 %s86, 1
    %p90 = scmp.eq.s32.totalorder %s17, 1
    %p91 = scmp.ne.s32.totalorder %s86, %s88
    %p92 = scmp.eq.s32.totalorder %s17, 0
    %p93 = por %p91, %p92
    %p94 = scmp.ne.s32.totalorder %s86, %s88
    %p95 = scmp.eq.s32.totalorder %s22, 1
    %p96 = por %p94, %p95
    %p97 = scmp.ne.s32.totalorder %s88, %s89
    %p98 = scmp.eq.s32.totalorder %s22, 0
    %p99 = por %p97, %p98
    %p100 = scmp.ne.s32.totalorder %s88, %s89
    %p101 = scmp.eq.s32.totalorder %s23, 1
    %p102 = por %p100, %p101
    %p104 = scmp.ne.s32.totalorder %s89, %s103
    %p105 = scmp.eq.s32.totalorder %s23, 0
    %p106 = por %p104, %p105
    %s108 = sadd.s32 %s107, 1
    %p111 = scmp.eq.s32.totalorder %s17, 1
    %p112 = scmp.ne.s32.totalorder %s107, %s109
    %p113 = scmp.eq.s32.totalorder %s17, 0
    %p114 = por %p112, %p113
    %p115 = scmp.ne.s32.totalorder %s107, %s109
    %p116 = scmp.eq.s32.totalorder %s22, 1
    %p117 = por %p115, %p116
    %p118 = scmp.ne.s32.totalorder %s109, %s110
    %p119 = scmp.eq.s32.totalorder %s22, 0
    %p120 = por %p118, %p119
    %p121 = scmp.ne.s32.totalorder %s109, %s110
    %p122 = scmp.eq.s32.totalorder %s23, 1
    %p123 = por %p121, %p122
    %p125 = scmp.ne.s32.totalorder %s110, %s124
    %p126 = scmp.eq.s32.totalorder %s23, 0
    %p127 = por %p125, %p126
    %s129 = sadd.s32 %s128, 1
    %p132 = scmp.eq.s32.totalorder %s17, 1
    %p133 = scmp.ne.s32.totalorder %s128, %s130
    %p134 = scmp.eq.s32.totalorder %s17, 0
    %p135 = por %p133, %p134
    %p136 = scmp.ne.s32.totalorder %s128, %s130
    %p137 = scmp.eq.s32.totalorder %s22, 1
    %p138 = por %p136, %p137
    %p139 = scmp.ne.s32.totalorder %s130, %s131
    %p140 = scmp.eq.s32.totalorder %s22, 0
    %p141 = por %p139, %p140
    %p142 = scmp.ne.s32.totalorder %s130, %s131
    %p143 = scmp.eq.s32.totalorder %s23, 1
    %p144 = por %p142, %p143
    %p146 = scmp.ne.s32.totalorder %s131, %s145
    %p147 = scmp.eq.s32.totalorder %s23, 0
    %p148 = por %p146, %p147
    %s150 = sadd.s32 %s149, 1
    %p153 = scmp.eq.s32.totalorder %s17, 1
    %p154 = scmp.ne.s32.totalorder %s149, %s151
    %p155 = scmp.eq.s32.totalorder %s17, 0
    %p156 = por %p154, %p155
    %p157 = scmp.ne.s32.totalorder %s149, %s151
    %p158 = scmp.eq.s32.totalorder %s22, 1
    %p159 = por %p157, %p158
    %p160 = scmp.ne.s32.totalorder %s151, %s152
    %p161 = scmp.eq.s32.totalorder %s22, 0
    %p162 = por %p160, %p161
    %p163 = scmp.ne.s32.totalorder %s151, %s152
    %p164 = scmp.eq.s32.totalorder %s23, 1
    %p165 = por %p163, %p164
    %p167 = scmp.ne.s32.totalorder %s152, %s166
    %p168 = scmp.eq.s32.totalorder %s23, 0
    %p169 = por %p167, %p168
    %s171 = sadd.s32 %s170, 1
    %p174 = scmp.eq.s32.totalorder %s17, 1
    %p175 = scmp.ne.s32.totalorder %s170, %s172
    %p176 = scmp.eq.s32.totalorder %s17, 0
    %p177 = por %p175, %p176
    %p178 = scmp.ne.s32.totalorder %s170, %s172
    %p179 = scmp.eq.s32.totalorder %s22, 1
    %p180 = por %p178, %p179
    %p181 = scmp.ne.s32.totalorder %s172, %s173
    %p182 = scmp.eq.s32.totalorder %s22, 0
    %p183 = por %p181, %p182
    %p184 = scmp.ne.s32.totalorder %s172, %s173
    %p185 = scmp.eq.s32.totalorder %s23, 1
    %p186 = por %p184, %p185
    %p188 = scmp.ne.s32.totalorder %s173, %s187
    %p189 = scmp.eq.s32.totalorder %s23, 0
    %p190 = por %p188, %p189
    %s192 = sadd.s32 %s191, 1
    %p195 = scmp.eq.s32.totalorder %s17, 1
    %p196 = scmp.ne.s32.totalorder %s191, %s193
    %p197 = scmp.eq.s32.totalorder %s17, 0
    %p198 = por %p196, %p197
    %p199 = scmp.ne.s32.totalorder %s191, %s193
    %p200 = scmp.eq.s32.totalorder %s22, 1
    %p201 = por %p199, %p200
    %p202 = scmp.ne.s32.totalorder %s193, %s194
    %p203 = scmp.eq.s32.totalorder %s22, 0
    %p204 = por %p202, %p203
    %p205 = scmp.ne.s32.totalorder %s193, %s194
    %p206 = scmp.eq.s32.totalorder %s23, 1
    %p207 = por %p205, %p206
    %p209 = scmp.ne.s32.totalorder %s194, %s208
    %p210 = scmp.eq.s32.totalorder %s23, 0
    %p211 = por %p209, %p210
    %s213 = sadd.s32 %s212, 1
    %p216 = scmp.eq.s32.totalorder %s17, 1
    %p217 = scmp.ne.s32.totalorder %s212, %s214
    %p218 = scmp.eq.s32.totalorder %s17, 0
    %p219 = por %p217, %p218
    %p220 = scmp.ne.s32.totalorder %s212, %s214
    %p221 = scmp.eq.s32.totalorder %s22, 1
    %p222 = por %p220, %p221
    %p223 = scmp.ne.s32.totalorder %s214, %s215
    %p224 = scmp.eq.s32.totalorder %s22, 0
    %p225 = por %p223, %p224
    %p226 = scmp.ne.s32.totalorder %s214, %s215
    %p227 = scmp.eq.s32.totalorder %s23, 1
    %p228 = por %p226, %p227
    %p230 = scmp.ne.s32.totalorder %s215, %s229
    %p231 = scmp.eq.s32.totalorder %s23, 0
    %p232 = por %p230, %p231
    %s234 = sadd.s32 %s233, 1
    %p237 = scmp.eq.s32.totalorder %s17, 1
    %p238 = scmp.ne.s32.totalorder %s233, %s235
    %p239 = scmp.eq.s32.totalorder %s17, 0
    %p240 = por %p238, %p239
    %p241 = scmp.ne.s32.totalorder %s233, %s235
    %p242 = scmp.eq.s32.totalorder %s22, 1
    %p243 = por %p241, %p242
    %p244 = scmp.ne.s32.totalorder %s235, %s236
    %p245 = scmp.eq.s32.totalorder %s22, 0
    %p246 = por %p244, %p245
    %p247 = scmp.ne.s32.totalorder %s235, %s236
    %p248 = scmp.eq.s32.totalorder %s23, 1
    %p249 = por %p247, %p248
    %p251 = scmp.ne.s32.totalorder %s236, %s250
    %p252 = scmp.eq.s32.totalorder %s23, 0
    %p253 = por %p251, %p252
    %s255 = sadd.s32 %s254, 1
    %p258 = scmp.eq.s32.totalorder %s17, 1
    %p259 = scmp.ne.s32.totalorder %s254, %s256
    %p260 = scmp.eq.s32.totalorder %s17, 0
    %p261 = por %p259, %p260
    %p262 = scmp.ne.s32.totalorder %s254, %s256
    %p263 = scmp.eq.s32.totalorder %s22, 1
    %p264 = por %p262, %p263
    %p265 = scmp.ne.s32.totalorder %s256, %s257
    %p266 = scmp.eq.s32.totalorder %s22, 0
    %p267 = por %p265, %p266
    %p268 = scmp.ne.s32.totalorder %s256, %s257
    %p269 = scmp.eq.s32.totalorder %s23, 1
    %p270 = por %p268, %p269
    %p272 = scmp.ne.s32.totalorder %s257, %s271
    %p273 = scmp.eq.s32.totalorder %s23, 0
    %p274 = por %p272, %p273
    %s275 = ssub.s32 %s24, %s36
    %s276 = ssub.s32 %s25, %s32
    %s277 = sor.u32 %s275, %s276
    %p278 = scmp.eq.s32.totalorder %s277, 0
    %s280 = sadd.s32 %s279, 1
    %s281 = scalar_select %p278, %s279, %s280
    %p284 = pneg %p278
    %p285 = scmp.eq.s32.totalorder %s17, 1
    %p286 = por %p284, %p285
    %p287 = scmp.ne.s32.totalorder %s279, %s282
    %p288 = scmp.eq.s32.totalorder %s17, 0
    %p289 = por %p287, %p288
    %p290 = scmp.ne.s32.totalorder %s279, %s282
    %p291 = scmp.eq.s32.totalorder %s22, 1
    %p292 = por %p290, %p291
    %p293 = scmp.ne.s32.totalorder %s282, %s283
    %p294 = scmp.eq.s32.totalorder %s22, 0
    %p295 = por %p293, %p294
    %p296 = scmp.ne.s32.totalorder %s282, %s283
    %p297 = scmp.eq.s32.totalorder %s23, 1
    %p298 = por %p296, %p297
    %p300 = scmp.ne.s32.totalorder %s283, %s299
    %p301 = scmp.eq.s32.totalorder %s23, 0
    %p302 = por %p300, %p301
    %p303 = scmp.le.s32.totalorder 1, %s17
    %p304 = scmp.lt.s32.totalorder %s17, 3
    %p305 = pnand %p303, %p304
    %p306 = pneg %p305
    // Predicated region
    $region9: #{featcae_forward.1} parent=5 // pred_check
      _
    $region10: #{featcae_forward.1} parent=5 // pred_check_branch
      %308 = sbr.rel (%p305) target = $region12
    $region11: #{featcae_forward.1} parent=5 // pred_region
      %s309 = ssub.s32 %s17, 1
      // Predicated region
      $region13: #{featcae_forward.1} parent=11 // pred_check
        %p310 = pneg %p78
      $region14: #{featcae_forward.1} parent=11 // pred_check_branch
        %312 = sbr.rel (%p310) target = $region16
      $region15: #{featcae_forward.1} parent=11 // pred_region
        _
      $region16: #{featcae_forward.1} parent=11 // pred_fallthru
        _
      // Predicated region
      $region17: #{featcae_forward.1} parent=11 // pred_check
        %p313 = pneg %p99
      $region18: #{featcae_forward.1} parent=11 // pred_check_branch
        %315 = sbr.rel (%p313) target = $region20
      $region19: #{featcae_forward.1} parent=11 // pred_region
        _
      $region20: #{featcae_forward.1} parent=11 // pred_fallthru
        _
      // Predicated region
      $region21: #{featcae_forward.1} parent=11 // pred_check
        %p316 = pneg %p120
      $region22: #{featcae_forward.1} parent=11 // pred_check_branch
        %318 = sbr.rel (%p316) target = $region24
      $region23: #{featcae_forward.1} parent=11 // pred_region
        _
      $region24: #{featcae_forward.1} parent=11 // pred_fallthru
        _
      // Predicated region
      $region25: #{featcae_forward.1} parent=11 // pred_check
        %p319 = pneg %p141
      $region26: #{featcae_forward.1} parent=11 // pred_check_branch
        %321 = sbr.rel (%p319) target = $region28
      $region27: #{featcae_forward.1} parent=11 // pred_region
        _
      $region28: #{featcae_forward.1} parent=11 // pred_fallthru
        _
      // Predicated region
      $region29: #{featcae_forward.1} parent=11 // pred_check
        %p322 = pneg %p162
      $region30: #{featcae_forward.1} parent=11 // pred_check_branch
        %324 = sbr.rel (%p322) target = $region32
      $region31: #{featcae_forward.1} parent=11 // pred_region
        _
      $region32: #{featcae_forward.1} parent=11 // pred_fallthru
        _
      // Predicated region
      $region33: #{featcae_forward.1} parent=11 // pred_check
        %p325 = pneg %p183
      $region34: #{featcae_forward.1} parent=11 // pred_check_branch
        %327 = sbr.rel (%p325) target = $region36
      $region35: #{featcae_forward.1} parent=11 // pred_region
        _
      $region36: #{featcae_forward.1} parent=11 // pred_fallthru
        _
      // Predicated region
      $region37: #{featcae_forward.1} parent=11 // pred_check
        %p328 = pneg %p204
      $region38: #{featcae_forward.1} parent=11 // pred_check_branch
        %330 = sbr.rel (%p328) target = $region40
      $region39: #{featcae_forward.1} parent=11 // pred_region
        _
      $region40: #{featcae_forward.1} parent=11 // pred_fallthru
        _
      // Predicated region
      $region41: #{featcae_forward.1} parent=11 // pred_check
        %p331 = pneg %p225
      $region42: #{featcae_forward.1} parent=11 // pred_check_branch
        %333 = sbr.rel (%p331) target = $region44
      $region43: #{featcae_forward.1} parent=11 // pred_region
        _
      $region44: #{featcae_forward.1} parent=11 // pred_fallthru
        _
      // Predicated region
      $region45: #{featcae_forward.1} parent=11 // pred_check
        %p334 = pneg %p246
      $region46: #{featcae_forward.1} parent=11 // pred_check_branch
        %336 = sbr.rel (%p334) target = $region48
      $region47: #{featcae_forward.1} parent=11 // pred_region
        _
      $region48: #{featcae_forward.1} parent=11 // pred_fallthru
        _
      // Predicated region
      $region49: #{featcae_forward.1} parent=11 // pred_check
        %p337 = pneg %p267
      $region50: #{featcae_forward.1} parent=11 // pred_check_branch
        %339 = sbr.rel (%p337) target = $region52
      $region51: #{featcae_forward.1} parent=11 // pred_region
        _
      $region52: #{featcae_forward.1} parent=11 // pred_fallthru
        _
    $region12: #{featcae_forward.1} parent=5 // pred_fallthru
      _
    %p340 = scmp.lt.s32.totalorder %s17, 2
    // Predicated region
    $region53: #{featcae_forward.1} parent=5 // pred_check
      %p341 = pneg %p340
    $region54: #{featcae_forward.1} parent=5 // pred_check_branch
      %343 = sbr.rel (%p341) target = $region56
    $region55: #{featcae_forward.1} parent=5 // pred_region
      // Predicated region
      $region57: #{featcae_forward.1} parent=55 // pred_check
        %p344 = pneg %p51
      $region58: #{featcae_forward.1} parent=55 // pred_check_branch
        %346 = sbr.rel (%p344) target = $region60
      $region59: #{featcae_forward.1} parent=55 // pred_region
        %s347 = smul.u32 2, %s25
        %p348 = scmp.lt.s32.totalorder %s24, 1
        %s349 = scalar_select %p348, %s24, 1
        %p350 = scmp.lt.s32.totalorder %s347, 1
        %s351 = scalar_select %p350, %s347, 1
        %s352 = smul.addr %s349, 16
        %s353 = sadd.s32 %s351, %s352
        %s354 = smul.addr %s353, 8
        %s355 = scalar_lea.vmem %s0, %s354
        %s356 = smul.u32 2, %s25
      $region60: #{featcae_forward.1} parent=55 // pred_fallthru
        _
    $region56: #{featcae_forward.1} parent=5 // pred_fallthru
      _
    %p357 = scmp.le.s32.totalorder 1, %s17
    %p358 = scmp.lt.s32.totalorder %s17, 3
    %p359 = pnand %p357, %p358
    %p360 = pneg %p359
    // Predicated region
    $region61: #{featcae_forward.1} parent=5 // pred_check
      _
    $region62: #{featcae_forward.1} parent=5 // pred_check_branch
      %362 = sbr.rel (%p359) target = $region64
    $region63: #{featcae_forward.1} parent=5 // pred_region
      %s363 = ssub.s32 %s17, 1
      %s364 = smul.u32 2, %s27
      %p365 = scmp.lt.s32.totalorder %s26, 1
      %s366 = scalar_select %p365, %s26, 1
      %p367 = scmp.lt.s32.totalorder %s364, 1
      %s368 = scalar_select %p367, %s364, 1
      %s369 = smul.addr %s366, 16
      %s370 = sadd.s32 %s368, %s369
      %s371 = smul.addr %s370, 8
      %s372 = scalar_lea.vmem %s0, %s371
      %p373 = pneg %p57
      %p374 = pneg %p54
      %p375 = pneg %p78
      %p376 = pneg %p75
      %p377 = pneg %p99
      %p378 = pneg %p96
      %p379 = pneg %p120
      %p380 = pneg %p117
      %p381 = pneg %p141
      %p382 = pneg %p138
      %p383 = pneg %p162
      %p384 = pneg %p159
      %p385 = pneg %p183
      %p386 = pneg %p180
      %p387 = pneg %p204
      %p388 = pneg %p201
      %p389 = pneg %p225
      %p390 = pneg %p222
      %p391 = pneg %p246
      %p392 = pneg %p243
      %p393 = pneg %p267
      %p394 = pneg %p264
      %p395 = pneg %p295
      %p396 = pneg %p292
      %s397 = smul.u32 2, %s27
      %p398 = scmp.lt.s32.totalorder %s26, 1
      %s399 = scalar_select %p398, %s26, 1
      %p400 = scmp.lt.s32.totalorder %s397, 1
      %s401 = scalar_select %p400, %s397, 1
      %s402 = smul.addr %s399, 16
      %s403 = sadd.s32 %s401, %s402
      %s404 = smul.addr %s403, 8
      %s405 = scalar_lea.vmem %s11, %s404
      %s406 = smul.u32 2, %s27
      %p407 = scmp.lt.s32.totalorder %s26, 1
      %s408 = scalar_select %p407, %s26, 1
      %p409 = scmp.lt.s32.totalorder %s406, 1
      %s410 = scalar_select %p409, %s406, 1
      %s411 = smul.addr %s408, 16
      %s412 = sadd.s32 %s410, %s411
      %s413 = smul.addr %s412, 8
      %s414 = scalar_lea.vmem %s0, %s413
      %s415 = smul.u32 2, %s27
      %s416 = smul.u32 2, %s27
      %p417 = scmp.lt.s32.totalorder %s26, 1
      %s418 = scalar_select %p417, %s26, 1
      %p419 = scmp.lt.s32.totalorder %s416, 1
      %s420 = scalar_select %p419, %s416, 1
      %s421 = smul.addr %s418, 16
      %s422 = sadd.s32 %s420, %s421
      %s423 = smul.addr %s422, 8
      %s424 = scalar_lea.vmem %s11, %s423
      %s425 = smul.u32 2, %s27
      %v427 = vld [vmem:[%s414] sm:$0xff]
      %v428 = vld [vmem:[%s414 + $0x8] sm:$0xff]
      %v429 = vld [vmem:[%s414 + $0x10] sm:$0xff]
      %v430 = vld [vmem:[%s414 + $0x18] sm:$0xff]
      %v431 = vld [vmem:[%s414 + $0x20] sm:$0xff]
      %v432 = vld [vmem:[%s414 + $0x28] sm:$0xff]
      %v433 = vld [vmem:[%s414 + $0x30] sm:$0xff]
      %v434 = vld [vmem:[%s414 + $0x38] sm:$0xff]
      %v435 = vld [vmem:[%s414 + $0x40] sm:$0xff]
      %v436 = vld [vmem:[%s414 + $0x48] sm:$0xff]
      %v437 = vld [vmem:[%s414 + $0x50] sm:$0xff]
      %v438 = vld [vmem:[%s414 + $0x58] sm:$0xff]
      %v439 = vld [vmem:[%s414 + $0x60] sm:$0xff]
      %v440 = vld [vmem:[%s414 + $0x68] sm:$0xff]
      %v441 = vld [vmem:[%s414 + $0x70] sm:$0xff]
      %v442 = vld [vmem:[%s414 + $0x78] sm:$0xff]
      %443 = vxpose.xlu0.b32.start [1/16] %v427, 128
      %444 = vxpose.xlu0.b32.cont [2/16] %v429, 128
      %445 = vxpose.xlu0.b32.cont [3/16] %v431, 128
      %446 = vxpose.xlu0.b32.cont [4/16] %v433, 128
      %447 = vxpose.xlu0.b32.cont [5/16] %v435, 128
      %448 = vxpose.xlu0.b32.cont [6/16] %v437, 128
      %449 = vxpose.xlu0.b32.cont [7/16] %v439, 128
      %450 = vxpose.xlu0.b32.cont [8/16] %v441, 128
      %451 = vxpose.xlu0.b32.cont [9/16] 0.0, 128
      %452 = vxpose.xlu0.b32.cont [10/16] 0.0, 128
      %453 = vxpose.xlu0.b32.cont [11/16] 0.0, 128
      %454 = vxpose.xlu0.b32.cont [12/16] 0.0, 128
      %455 = vxpose.xlu0.b32.cont [13/16] 0.0, 128
      %456 = vxpose.xlu0.b32.cont [14/16] 0.0, 128
      %457 = vxpose.xlu0.b32.cont [15/16] 0.0, 128
      %458 = vxpose.xlu0.b32.end [16/16] 0.0, 128
      %v459 = vpop.trf.xlu0
      %v460 = vpop.trf.xlu0
      %v461 = vpop.trf.xlu0
      %v462 = vpop.trf.xlu0
      %v463 = vpop.trf.xlu0
      %v464 = vpop.trf.xlu0
      %v465 = vpop.trf.xlu0
      %v466 = vpop.trf.xlu0
      %v467 = vpop.trf.xlu0
      %v468 = vpop.trf.xlu0
      %v469 = vpop.trf.xlu0
      %v470 = vpop.trf.xlu0
      %v471 = vpop.trf.xlu0
      %v472 = vpop.trf.xlu0
      %v473 = vpop.trf.xlu0
      %v474 = vpop.trf.xlu0
      %475 = vxpose.xlu0.b32.start [1/16] %v428, 128
      %476 = vxpose.xlu0.b32.cont [2/16] %v430, 128
      %477 = vxpose.xlu0.b32.cont [3/16] %v432, 128
      %478 = vxpose.xlu0.b32.cont [4/16] %v434, 128
      %479 = vxpose.xlu0.b32.cont [5/16] %v436, 128
      %480 = vxpose.xlu0.b32.cont [6/16] %v438, 128
      %481 = vxpose.xlu0.b32.cont [7/16] %v440, 128
      %482 = vxpose.xlu0.b32.cont [8/16] %v442, 128
      %483 = vxpose.xlu0.b32.cont [9/16] 0.0, 128
      %484 = vxpose.xlu0.b32.cont [10/16] 0.0, 128
      %485 = vxpose.xlu0.b32.cont [11/16] 0.0, 128
      %486 = vxpose.xlu0.b32.cont [12/16] 0.0, 128
      %487 = vxpose.xlu0.b32.cont [13/16] 0.0, 128
      %488 = vxpose.xlu0.b32.cont [14/16] 0.0, 128
      %489 = vxpose.xlu0.b32.cont [15/16] 0.0, 128
      %490 = vxpose.xlu0.b32.end [16/16] 0.0, 128
      %v491 = vpop.trf.xlu0
      %v492 = vpop.trf.xlu0
      %v493 = vpop.trf.xlu0
      %v494 = vpop.trf.xlu0
      %v495 = vpop.trf.xlu0
      %v496 = vpop.trf.xlu0
      %v497 = vpop.trf.xlu0
      %v498 = vpop.trf.xlu0
      %v499 = vpop.trf.xlu0
      %v500 = vpop.trf.xlu0
      %v501 = vpop.trf.xlu0
      %v502 = vpop.trf.xlu0
      %v503 = vpop.trf.xlu0
      %v504 = vpop.trf.xlu0
      %v505 = vpop.trf.xlu0
      %v506 = vpop.trf.xlu0
      %v507 = vpack.c.bf16 %v460, %v459
      %v508 = vpack.c.bf16 %v462, %v461
      %v509 = vpack.c.bf16 %v464, %v463
      %v510 = vpack.c.bf16 %v466, %v465
      %v511 = vpack.c.bf16 %v468, %v467
      %v512 = vpack.c.bf16 %v470, %v469
      %v513 = vpack.c.bf16 %v472, %v471
      %v514 = vpack.c.bf16 %v474, %v473
      %v515 = vpack.c.bf16 %v492, %v491
      %v516 = vpack.c.bf16 %v494, %v493
      %v517 = vpack.c.bf16 %v496, %v495
      %v518 = vpack.c.bf16 %v498, %v497
      %v519 = vpack.c.bf16 %v500, %v499
      %v520 = vpack.c.bf16 %v502, %v501
      %v521 = vpack.c.bf16 %v504, %v503
      %v522 = vpack.c.bf16 %v506, %v505
      %v523 = vld [vmem:[%s1] sm:$0xf]
      %v524 = vld [vmem:[%s1 + $0x4] sm:$0xf]
      %v525 = vld [vmem:[%s1 + $0x8] sm:$0xf]
      %v526 = vld [vmem:[%s1 + $0xc] sm:$0xf]
      %v527 = vld [vmem:[%s1 + $0x10] sm:$0xf]
      %v528 = vld [vmem:[%s1 + $0x14] sm:$0xf]
      %v529 = vld [vmem:[%s1 + $0x18] sm:$0xf]
      %v530 = vld [vmem:[%s1 + $0x1c] sm:$0xf]
      %v531 = vld [vmem:[%s2] sm:$0x1]
      %v533 = vlaneseq
      %v534 = vshrl.u32 %v533, 7
      %v535 = vsub.s32 0, %v534
      %v536 = vrot.slane %v531, %v535
      %v546 = vunpack.c.l.b16 %v523
      %v547 = vunpack.c.l.b16 %v524
      %v548 = vunpack.c.l.b16 %v525
      %v549 = vunpack.c.l.b16 %v526
      %v550 = vunpack.c.l.b16 %v527
      %v551 = vunpack.c.l.b16 %v528
      %v552 = vunpack.c.l.b16 %v529
      %v553 = vunpack.c.l.b16 %v530
      %v554 = vpack.c.b16 %v547, %v546
      %v555 = vpack.c.b16 %v549, %v548
      %v556 = vpack.c.b16 %v551, %v550
      %v557 = vpack.c.b16 %v553, %v552
      %vm562 = vcmask 523264
      %v564 = vsel %vm562, %v507, 0
      %v567 = vsel %vm562, %v508, 0
      %v570 = vsel %vm562, %v509, 0
      %v573 = vsel %vm562, %v510, 0
      %v576 = vsel %vm562, %v511, 0
      %v579 = vsel %vm562, %v512, 0
      %v582 = vsel %vm562, %v513, 0
      %v585 = vsel %vm562, %v514, 0
      %v588 = vsel %vm562, %v515, 0
      %v591 = vsel %vm562, %v516, 0
      %v594 = vsel %vm562, %v517, 0
      %v597 = vsel %vm562, %v518, 0
      %v600 = vsel %vm562, %v519, 0
      %v603 = vsel %vm562, %v520, 0
      %v606 = vsel %vm562, %v521, 0
      %v609 = vsel %vm562, %v522, 0
      %611 = vmatprep.subr.bf16.mxu0 0
      %612 = vmatpush1.bf16.msra.mxu0 %v554
      %613 = vmatprep.subr.bf16.mxu0 0
      %614 = vmatpush1.bf16.msra.mxu0 %v555
      %615 = vmatprep.subr.bf16.mxu0 0
      %616 = vmatpush1.bf16.msra.mxu0 %v556
      %617 = vmatprep.subr.bf16.mxu0 0
      %618 = vmatpush1.bf16.msra.mxu0 %v557
      %619 = vmatprep.subr.bf16.mxu0 0
      %620 = vmatpush1.bf16.msra.mxu0 0
      %621 = vmatprep.subr.bf16.mxu0 0
      %622 = vmatpush1.bf16.msra.mxu0 0
      %623 = vmatprep.subr.bf16.mxu0 0
      %624 = vmatpush1.bf16.msra.mxu0 0
      %625 = vmatprep.subr.bf16.mxu0 0
      %626 = vmatpush1.bf16.msra.mxu0 0
      %627 = vmatprep.subr.bf16.mxu0 0
      %628 = vmatpush1.bf16.msra.mxu0 0
      %629 = vmatprep.subr.bf16.mxu0 0
      %630 = vmatpush1.bf16.msra.mxu0 0
      %631 = vmatprep.subr.bf16.mxu0 0
      %632 = vmatpush1.bf16.msra.mxu0 0
      %633 = vmatprep.subr.bf16.mxu0 0
      %634 = vmatpush1.bf16.msra.mxu0 0
      %635 = vmatprep.subr.bf16.mxu0 0
      %636 = vmatpush1.bf16.msra.mxu0 0
      %637 = vmatprep.subr.bf16.mxu0 0
      %638 = vmatpush1.bf16.msra.mxu0 0
      %639 = vmatprep.subr.bf16.mxu0 0
      %640 = vmatpush1.bf16.msra.mxu0 0
      %641 = vmatprep.subr.bf16.mxu0 0
      %642 = vmatpush1.bf16.msra.mxu0 0
      %643 = vmatprep.mubr.bf16.mxu0 0
      %644 = vmatmul.mubr.bf16.gmra.mrb[0].mxu0 %v564
      %v645 = vpop.f32.mrb[0].mxu0
      %v646 = vadd.f32 %v536, %v645
      %v647 = vpop.f32.mrb[0].mxu0
      %v648 = vpop.f32.mrb[0].mxu0
      %v649 = vadd.f32 %v536, %v648
      %v650 = vpop.f32.mrb[0].mxu0
      %651 = vmatprep.mubr.bf16.mxu0 0
      %652 = vmatmul.mubr.bf16.gmra.mrb[0].mxu0 %v567
      %v653 = vpop.f32.mrb[0].mxu0
      %v654 = vadd.f32 %v536, %v653
      %v655 = vpop.f32.mrb[0].mxu0
      %v656 = vpop.f32.mrb[0].mxu0
      %v657 = vadd.f32 %v536, %v656
      %v658 = vpop.f32.mrb[0].mxu0
      %659 = vmatprep.mubr.bf16.mxu0 0
      %660 = vmatmul.mubr.bf16.gmra.mrb[0].mxu0 %v570
      %v661 = vpop.f32.mrb[0].mxu0
      %v662 = vadd.f32 %v536, %v661
      %v663 = vpop.f32.mrb[0].mxu0
      %v664 = vpop.f32.mrb[0].mxu0
      %v665 = vadd.f32 %v536, %v664
      %v666 = vpop.f32.mrb[0].mxu0
      %667 = vmatprep.mubr.bf16.mxu0 0
      %668 = vmatmul.mubr.bf16.gmra.mrb[0].mxu0 %v573
      %v669 = vpop.f32.mrb[0].mxu0
      %v670 = vadd.f32 %v536, %v669
      %v671 = vpop.f32.mrb[0].mxu0
      %v672 = vpop.f32.mrb[0].mxu0
      %v673 = vadd.f32 %v536, %v672
      %v674 = vpop.f32.mrb[0].mxu0
      %675 = vmatprep.mubr.bf16.mxu0 0
      %676 = vmatmul.mubr.bf16.gmra.mrb[0].mxu0 %v576
      %v677 = vpop.f32.mrb[0].mxu0
      %v678 = vadd.f32 %v536, %v677
      %v679 = vpop.f32.mrb[0].mxu0
      %v680 = vpop.f32.mrb[0].mxu0
      %v681 = vadd.f32 %v536, %v680
      %v682 = vpop.f32.mrb[0].mxu0
      %683 = vmatprep.mubr.bf16.mxu0 0
      %684 = vmatmul.mubr.bf16.gmra.mrb[0].mxu0 %v579
      %v685 = vpop.f32.mrb[0].mxu0
      %v686 = vadd.f32 %v536, %v685
      %v687 = vpop.f32.mrb[0].mxu0
      %v688 = vpop.f32.mrb[0].mxu0
      %v689 = vadd.f32 %v536, %v688
      %v690 = vpop.f32.mrb[0].mxu0
      %691 = vmatprep.mubr.bf16.mxu0 0
      %692 = vmatmul.mubr.bf16.gmra.mrb[0].mxu0 %v582
      %v693 = vpop.f32.mrb[0].mxu0
      %v694 = vadd.f32 %v536, %v693
      %v695 = vpop.f32.mrb[0].mxu0
      %v696 = vpop.f32.mrb[0].mxu0
      %v697 = vadd.f32 %v536, %v696
      %v698 = vpop.f32.mrb[0].mxu0
      %699 = vmatprep.mubr.bf16.mxu0 0
      %700 = vmatmul.mubr.bf16.gmra.mrb[0].mxu0 %v585
      %v701 = vpop.f32.mrb[0].mxu0
      %v702 = vadd.f32 %v536, %v701
      %v703 = vpop.f32.mrb[0].mxu0
      %v704 = vpop.f32.mrb[0].mxu0
      %v705 = vadd.f32 %v536, %v704
      %v706 = vpop.f32.mrb[0].mxu0
      %707 = vmatprep.mubr.bf16.mxu0 0
      %708 = vmatmul.mubr.bf16.gmra.mrb[0].mxu0 %v588
      %v709 = vpop.f32.mrb[0].mxu0
      %v710 = vadd.f32 %v536, %v709
      %v711 = vpop.f32.mrb[0].mxu0
      %v712 = vpop.f32.mrb[0].mxu0
      %v713 = vadd.f32 %v536, %v712
      %v714 = vpop.f32.mrb[0].mxu0
      %715 = vmatprep.mubr.bf16.mxu0 0
      %716 = vmatmul.mubr.bf16.gmra.mrb[0].mxu0 %v591
      %v717 = vpop.f32.mrb[0].mxu0
      %v718 = vadd.f32 %v536, %v717
      %v719 = vpop.f32.mrb[0].mxu0
      %v720 = vpop.f32.mrb[0].mxu0
      %v721 = vadd.f32 %v536, %v720
      %v722 = vpop.f32.mrb[0].mxu0
      %723 = vmatprep.mubr.bf16.mxu0 0
      %724 = vmatmul.mubr.bf16.gmra.mrb[0].mxu0 %v594
      %v725 = vpop.f32.mrb[0].mxu0
      %v726 = vadd.f32 %v536, %v725
      %v727 = vpop.f32.mrb[0].mxu0
      %v728 = vpop.f32.mrb[0].mxu0
      %v729 = vadd.f32 %v536, %v728
      %v730 = vpop.f32.mrb[0].mxu0
      %731 = vmatprep.mubr.bf16.mxu0 0
      %732 = vmatmul.mubr.bf16.gmra.mrb[0].mxu0 %v597
      %v733 = vpop.f32.mrb[0].mxu0
      %v734 = vadd.f32 %v536, %v733
      %v735 = vpop.f32.mrb[0].mxu0
      %v736 = vpop.f32.mrb[0].mxu0
      %v737 = vadd.f32 %v536, %v736
      %v738 = vpop.f32.mrb[0].mxu0
      %739 = vmatprep.mubr.bf16.mxu0 0
      %740 = vmatmul.mubr.bf16.gmra.mrb[0].mxu0 %v600
      %v741 = vpop.f32.mrb[0].mxu0
      %v742 = vadd.f32 %v536, %v741
      %v743 = vpop.f32.mrb[0].mxu0
      %v744 = vpop.f32.mrb[0].mxu0
      %v745 = vadd.f32 %v536, %v744
      %v746 = vpop.f32.mrb[0].mxu0
      %747 = vmatprep.mubr.bf16.mxu0 0
      %748 = vmatmul.mubr.bf16.gmra.mrb[0].mxu0 %v603
      %v749 = vpop.f32.mrb[0].mxu0
      %v750 = vadd.f32 %v536, %v749
      %v751 = vpop.f32.mrb[0].mxu0
      %v752 = vpop.f32.mrb[0].mxu0
      %v753 = vadd.f32 %v536, %v752
      %v754 = vpop.f32.mrb[0].mxu0
      %755 = vmatprep.mubr.bf16.mxu0 0
      %756 = vmatmul.mubr.bf16.gmra.mrb[0].mxu0 %v606
      %v757 = vpop.f32.mrb[0].mxu0
      %v758 = vadd.f32 %v536, %v757
      %v759 = vpop.f32.mrb[0].mxu0
      %v760 = vpop.f32.mrb[0].mxu0
      %v761 = vadd.f32 %v536, %v760
      %v762 = vpop.f32.mrb[0].mxu0
      %763 = vmatprep.mubr.bf16.mxu0 0
      %764 = vmatmul.mubr.bf16.gmra.mrb[0].mxu0 %v609
      %v765 = vpop.f32.mrb[0].mxu0
      %v766 = vadd.f32 %v536, %v765
      %v767 = vpop.f32.mrb[0].mxu0
      %v768 = vpop.f32.mrb[0].mxu0
      %v769 = vadd.f32 %v536, %v768
      %v770 = vpop.f32.mrb[0].mxu0
      %771 = vdwg.mxu0
      %v772 = vmax.f32 %v646, 0.0
      %v773 = vmax.f32 %v649, 0.0
      %v774 = vmax.f32 %v654, 0.0
      %v775 = vmax.f32 %v657, 0.0
      %v776 = vmax.f32 %v662, 0.0
      %v777 = vmax.f32 %v665, 0.0
      %v778 = vmax.f32 %v670, 0.0
      %v779 = vmax.f32 %v673, 0.0
      %v780 = vmax.f32 %v678, 0.0
      %v781 = vmax.f32 %v681, 0.0
      %v782 = vmax.f32 %v686, 0.0
      %v783 = vmax.f32 %v689, 0.0
      %v784 = vmax.f32 %v694, 0.0
      %v785 = vmax.f32 %v697, 0.0
      %v786 = vmax.f32 %v702, 0.0
      %v787 = vmax.f32 %v705, 0.0
      %v788 = vmax.f32 %v710, 0.0
      %v789 = vmax.f32 %v713, 0.0
      %v790 = vmax.f32 %v718, 0.0
      %v791 = vmax.f32 %v721, 0.0
      %v792 = vmax.f32 %v726, 0.0
      %v793 = vmax.f32 %v729, 0.0
      %v794 = vmax.f32 %v734, 0.0
      %v795 = vmax.f32 %v737, 0.0
      %v796 = vmax.f32 %v742, 0.0
      %v797 = vmax.f32 %v745, 0.0
      %v798 = vmax.f32 %v750, 0.0
      %v799 = vmax.f32 %v753, 0.0
      %v800 = vmax.f32 %v758, 0.0
      %v801 = vmax.f32 %v761, 0.0
      %v802 = vmax.f32 %v766, 0.0
      %v803 = vmax.f32 %v769, 0.0
      %v804 = vpack.c.bf16 %v773, %v772
      %v805 = vpack.c.bf16 %v775, %v774
      %v806 = vpack.c.bf16 %v777, %v776
      %v807 = vpack.c.bf16 %v779, %v778
      %v808 = vpack.c.bf16 %v781, %v780
      %v809 = vpack.c.bf16 %v783, %v782
      %v810 = vpack.c.bf16 %v785, %v784
      %v811 = vpack.c.bf16 %v787, %v786
      %v812 = vpack.c.bf16 %v789, %v788
      %v813 = vpack.c.bf16 %v791, %v790
      %v814 = vpack.c.bf16 %v793, %v792
      %v815 = vpack.c.bf16 %v795, %v794
      %v816 = vpack.c.bf16 %v797, %v796
      %v817 = vpack.c.bf16 %v799, %v798
      %v818 = vpack.c.bf16 %v801, %v800
      %v819 = vpack.c.bf16 %v803, %v802
      %v820 = vld [vmem:[%s3] sm:$0xf]
      %v821 = vld [vmem:[%s3 + $0x4] sm:$0xf]
      %v822 = vld [vmem:[%s3 + $0x8] sm:$0xf]
      %v823 = vld [vmem:[%s3 + $0xc] sm:$0xf]
      %v824 = vld [vmem:[%s3 + $0x10] sm:$0xf]
      %v825 = vld [vmem:[%s4] sm:$0x1]
      %v827 = vlaneseq
      %v828 = vshrl.u32 %v827, 7
      %v829 = vsub.s32 0, %v828
      %v830 = vrot.slane %v825, %v829
      %v837 = vunpack.c.l.b16 %v820
      %v838 = vunpack.c.l.b16 %v821
      %v839 = vunpack.c.l.b16 %v822
      %v840 = vunpack.c.l.b16 %v823
      %v841 = vunpack.c.l.b16 %v824
      %v842 = vpack.c.b16 %v838, %v837
      %v843 = vpack.c.b16 %v840, %v839
      %v844 = vpack.c.b16 %v841, %v841
      %vm847 = vcmask 326656
      %v849 = vsel %vm847, %v804, 0
      %v852 = vsel %vm847, %v805, 0
      %v855 = vsel %vm847, %v806, 0
      %v858 = vsel %vm847, %v807, 0
      %v861 = vsel %vm847, %v808, 0
      %v864 = vsel %vm847, %v809, 0
      %v867 = vsel %vm847, %v810, 0
      %v870 = vsel %vm847, %v811, 0
      %v873 = vsel %vm847, %v812, 0
      %v876 = vsel %vm847, %v813, 0
      %v879 = vsel %vm847, %v814, 0
      %v882 = vsel %vm847, %v815, 0
      %v885 = vsel %vm847, %v816, 0
      %v888 = vsel %vm847, %v817, 0
      %v891 = vsel %vm847, %v818, 0
      %v894 = vsel %vm847, %v819, 0
      %vm896 = vcmask 1043456
      %v898 = vsel %vm896, %v844, 0
      %900 = vmatprep.subr.bf16.mxu0 0
      %901 = vmatpush1.bf16.msra.mxu0 %v842
      %902 = vmatprep.subr.bf16.mxu0 0
      %903 = vmatpush1.bf16.msra.mxu0 %v843
      %904 = vmatprep.subr.bf16.mxu0 0
      %905 = vmatpush1.bf16.msra.mxu0 %v898
      %906 = vmatprep.subr.bf16.mxu0 0
      %907 = vmatpush1.bf16.msra.mxu0 0
      %908 = vmatprep.subr.bf16.mxu0 0
      %909 = vmatpush1.bf16.msra.mxu0 0
      %910 = vmatprep.subr.bf16.mxu0 0
      %911 = vmatpush1.bf16.msra.mxu0 0
      %912 = vmatprep.subr.bf16.mxu0 0
      %913 = vmatpush1.bf16.msra.mxu0 0
      %914 = vmatprep.subr.bf16.mxu0 0
      %915 = vmatpush1.bf16.msra.mxu0 0
      %916 = vmatprep.subr.bf16.mxu0 0
      %917 = vmatpush1.bf16.msra.mxu0 0
      %918 = vmatprep.subr.bf16.mxu0 0
      %919 = vmatpush1.bf16.msra.mxu0 0
      %920 = vmatprep.subr.bf16.mxu0 0
      %921 = vmatpush1.bf16.msra.mxu0 0
      %922 = vmatprep.subr.bf16.mxu0 0
      %923 = vmatpush1.bf16.msra.mxu0 0
      %924 = vmatprep.subr.bf16.mxu0 0
      %925 = vmatpush1.bf16.msra.mxu0 0
      %926 = vmatprep.subr.bf16.mxu0 0
      %927 = vmatpush1.bf16.msra.mxu0 0
      %928 = vmatprep.subr.bf16.mxu0 0
      %929 = vmatpush1.bf16.msra.mxu0 0
      %930 = vmatprep.subr.bf16.mxu0 0
      %931 = vmatpush1.bf16.msra.mxu0 0
      %932 = vmatprep.mubr.bf16.mxu0 0
      %933 = vmatmul.mubr.bf16.gmra.mrb[0].mxu0 %v849
      %v934 = vpop.f32.mrb[0].mxu0
      %v935 = vadd.f32 %v830, %v934
      %v936 = vpop.f32.mrb[0].mxu0
      %v937 = vpop.f32.mrb[0].mxu0
      %v938 = vadd.f32 %v830, %v937
      %v939 = vpop.f32.mrb[0].mxu0
      %940 = vmatprep.mubr.bf16.mxu0 0
      %941 = vmatmul.mubr.bf16.gmra.mrb[0].mxu0 %v852
      %v942 = vpop.f32.mrb[0].mxu0
      %v943 = vadd.f32 %v830, %v942
      %v944 = vpop.f32.mrb[0].mxu0
      %v945 = vpop.f32.mrb[0].mxu0
      %v946 = vadd.f32 %v830, %v945
      %v947 = vpop.f32.mrb[0].mxu0
      %948 = vmatprep.mubr.bf16.mxu0 0
      %949 = vmatmul.mubr.bf16.gmra.mrb[0].mxu0 %v855
      %v950 = vpop.f32.mrb[0].mxu0
      %v951 = vadd.f32 %v830, %v950
      %v952 = vpop.f32.mrb[0].mxu0
      %v953 = vpop.f32.mrb[0].mxu0
      %v954 = vadd.f32 %v830, %v953
      %v955 = vpop.f32.mrb[0].mxu0
      %956 = vmatprep.mubr.bf16.mxu0 0
      %957 = vmatmul.mubr.bf16.gmra.mrb[0].mxu0 %v858
      %v958 = vpop.f32.mrb[0].mxu0
      %v959 = vadd.f32 %v830, %v958
      %v960 = vpop.f32.mrb[0].mxu0
      %v961 = vpop.f32.mrb[0].mxu0
      %v962 = vadd.f32 %v830, %v961
      %v963 = vpop.f32.mrb[0].mxu0
      %964 = vmatprep.mubr.bf16.mxu0 0
      %965 = vmatmul.mubr.bf16.gmra.mrb[0].mxu0 %v861
      %v966 = vpop.f32.mrb[0].mxu0
      %v967 = vadd.f32 %v830, %v966
      %v968 = vpop.f32.mrb[0].mxu0
      %v969 = vpop.f32.mrb[0].mxu0
      %v970 = vadd.f32 %v830, %v969
      %v971 = vpop.f32.mrb[0].mxu0
      %972 = vmatprep.mubr.bf16.mxu0 0
      %973 = vmatmul.mubr.bf16.gmra.mrb[0].mxu0 %v864
      %v974 = vpop.f32.mrb[0].mxu0
      %v975 = vadd.f32 %v830, %v974
      %v976 = vpop.f32.mrb[0].mxu0
      %v977 = vpop.f32.mrb[0].mxu0
      %v978 = vadd.f32 %v830, %v977
      %v979 = vpop.f32.mrb[0].mxu0
      %980 = vmatprep.mubr.bf16.mxu0 0
      %981 = vmatmul.mubr.bf16.gmra.mrb[0].mxu0 %v867
      %v982 = vpop.f32.mrb[0].mxu0
      %v983 = vadd.f32 %v830, %v982
      %v984 = vpop.f32.mrb[0].mxu0
      %v985 = vpop.f32.mrb[0].mxu0
      %v986 = vadd.f32 %v830, %v985
      %v987 = vpop.f32.mrb[0].mxu0
      %988 = vmatprep.mubr.bf16.mxu0 0
      %989 = vmatmul.mubr.bf16.gmra.mrb[0].mxu0 %v870
      %v990 = vpop.f32.mrb[0].mxu0
      %v991 = vadd.f32 %v830, %v990
      %v992 = vpop.f32.mrb[0].mxu0
      %v993 = vpop.f32.mrb[0].mxu0
      %v994 = vadd.f32 %v830, %v993
      %v995 = vpop.f32.mrb[0].mxu0
      %996 = vmatprep.mubr.bf16.mxu0 0
      %997 = vmatmul.mubr.bf16.gmra.mrb[0].mxu0 %v873
      %v998 = vpop.f32.mrb[0].mxu0
      %v999 = vadd.f32 %v830, %v998
      %v1000 = vpop.f32.mrb[0].mxu0
      %v1001 = vpop.f32.mrb[0].mxu0
      %v1002 = vadd.f32 %v830, %v1001
      %v1003 = vpop.f32.mrb[0].mxu0
      %1004 = vmatprep.mubr.bf16.mxu0 0
      %1005 = vmatmul.mubr.bf16.gmra.mrb[0].mxu0 %v876
      %v1006 = vpop.f32.mrb[0].mxu0
      %v1007 = vadd.f32 %v830, %v1006
      %v1008 = vpop.f32.mrb[0].mxu0
      %v1009 = vpop.f32.mrb[0].mxu0
      %v1010 = vadd.f32 %v830, %v1009
      %v1011 = vpop.f32.mrb[0].mxu0
      %1012 = vmatprep.mubr.bf16.mxu0 0
      %1013 = vmatmul.mubr.bf16.gmra.mrb[0].mxu0 %v879
      %v1014 = vpop.f32.mrb[0].mxu0
      %v1015 = vadd.f32 %v830, %v1014
      %v1016 = vpop.f32.mrb[0].mxu0
      %v1017 = vpop.f32.mrb[0].mxu0
      %v1018 = vadd.f32 %v830, %v1017
      %v1019 = vpop.f32.mrb[0].mxu0
      %1020 = vmatprep.mubr.bf16.mxu0 0
      %1021 = vmatmul.mubr.bf16.gmra.mrb[0].mxu0 %v882
      %v1022 = vpop.f32.mrb[0].mxu0
      %v1023 = vadd.f32 %v830, %v1022
      %v1024 = vpop.f32.mrb[0].mxu0
      %v1025 = vpop.f32.mrb[0].mxu0
      %v1026 = vadd.f32 %v830, %v1025
      %v1027 = vpop.f32.mrb[0].mxu0
      %1028 = vmatprep.mubr.bf16.mxu0 0
      %1029 = vmatmul.mubr.bf16.gmra.mrb[0].mxu0 %v885
      %v1030 = vpop.f32.mrb[0].mxu0
      %v1031 = vadd.f32 %v830, %v1030
      %v1032 = vpop.f32.mrb[0].mxu0
      %v1033 = vpop.f32.mrb[0].mxu0
      %v1034 = vadd.f32 %v830, %v1033
      %v1035 = vpop.f32.mrb[0].mxu0
      %1036 = vmatprep.mubr.bf16.mxu0 0
      %1037 = vmatmul.mubr.bf16.gmra.mrb[0].mxu0 %v888
      %v1038 = vpop.f32.mrb[0].mxu0
      %v1039 = vadd.f32 %v830, %v1038
      %v1040 = vpop.f32.mrb[0].mxu0
      %v1041 = vpop.f32.mrb[0].mxu0
      %v1042 = vadd.f32 %v830, %v1041
      %v1043 = vpop.f32.mrb[0].mxu0
      %1044 = vmatprep.mubr.bf16.mxu0 0
      %1045 = vmatmul.mubr.bf16.gmra.mrb[0].mxu0 %v891
      %v1046 = vpop.f32.mrb[0].mxu0
      %v1047 = vadd.f32 %v830, %v1046
      %v1048 = vpop.f32.mrb[0].mxu0
      %v1049 = vpop.f32.mrb[0].mxu0
      %v1050 = vadd.f32 %v830, %v1049
      %v1051 = vpop.f32.mrb[0].mxu0
      %1052 = vmatprep.mubr.bf16.mxu0 0
      %1053 = vmatmul.mubr.bf16.gmra.mrb[0].mxu0 %v894
      %v1054 = vpop.f32.mrb[0].mxu0
      %v1055 = vadd.f32 %v830, %v1054
      %v1056 = vpop.f32.mrb[0].mxu0
      %v1057 = vpop.f32.mrb[0].mxu0
      %v1058 = vadd.f32 %v830, %v1057
      %v1059 = vpop.f32.mrb[0].mxu0
      %1060 = vdwg.mxu0
      %v1061 = vmax.f32 %v935, 0.0
      %v1062 = vmax.f32 %v938, 0.0
      %v1063 = vmax.f32 %v943, 0.0
      %v1064 = vmax.f32 %v946, 0.0
      %v1065 = vmax.f32 %v951, 0.0
      %v1066 = vmax.f32 %v954, 0.0
      %v1067 = vmax.f32 %v959, 0.0
      %v1068 = vmax.f32 %v962, 0.0
      %v1069 = vmax.f32 %v967, 0.0
      %v1070 = vmax.f32 %v970, 0.0
      %v1071 = vmax.f32 %v975, 0.0
      %v1072 = vmax.f32 %v978, 0.0
      %v1073 = vmax.f32 %v983, 0.0
      %v1074 = vmax.f32 %v986, 0.0
      %v1075 = vmax.f32 %v991, 0.0
      %v1076 = vmax.f32 %v994, 0.0
      %v1077 = vmax.f32 %v999, 0.0
      %v1078 = vmax.f32 %v1002, 0.0
      %v1079 = vmax.f32 %v1007, 0.0
      %v1080 = vmax.f32 %v1010, 0.0
      %v1081 = vmax.f32 %v1015, 0.0
      %v1082 = vmax.f32 %v1018, 0.0
      %v1083 = vmax.f32 %v1023, 0.0
      %v1084 = vmax.f32 %v1026, 0.0
      %v1085 = vmax.f32 %v1031, 0.0
      %v1086 = vmax.f32 %v1034, 0.0
      %v1087 = vmax.f32 %v1039, 0.0
      %v1088 = vmax.f32 %v1042, 0.0
      %v1089 = vmax.f32 %v1047, 0.0
      %v1090 = vmax.f32 %v1050, 0.0
      %v1091 = vmax.f32 %v1055, 0.0
      %v1092 = vmax.f32 %v1058, 0.0
      %v1093 = vpack.c.bf16 %v1062, %v1061
      %v1094 = vpack.c.bf16 %v1064, %v1063
      %v1095 = vpack.c.bf16 %v1066, %v1065
      %v1096 = vpack.c.bf16 %v1068, %v1067
      %v1097 = vpack.c.bf16 %v1070, %v1069
      %v1098 = vpack.c.bf16 %v1072, %v1071
      %v1099 = vpack.c.bf16 %v1074, %v1073
      %v1100 = vpack.c.bf16 %v1076, %v1075
      %v1101 = vpack.c.bf16 %v1078, %v1077
      %v1102 = vpack.c.bf16 %v1080, %v1079
      %v1103 = vpack.c.bf16 %v1082, %v1081
      %v1104 = vpack.c.bf16 %v1084, %v1083
      %v1105 = vpack.c.bf16 %v1086, %v1085
      %v1106 = vpack.c.bf16 %v1088, %v1087
      %v1107 = vpack.c.bf16 %v1090, %v1089
      %v1108 = vpack.c.bf16 %v1092, %v1091
      %v1109 = vld [vmem:[%s5] sm:$0xf]
      %v1110 = vld [vmem:[%s5 + $0x4] sm:$0xf]
      %v1111 = vld [vmem:[%s6] sm:$0x1]
      %v1113 = vlaneseq
      %v1114 = vshrl.u32 %v1113, 7
      %v1115 = vsub.s32 0, %v1114
      %v1116 = vrot.slane %v1111, %v1115
      %v1120 = vunpack.c.l.b16 %v1109
      %v1121 = vunpack.c.l.b16 %v1110
      %v1122 = vpack.c.b16 %v1121, %v1120
      %vm1124 = vcmask 130048
      %v1126 = vsel %vm1124, %v1093, 0
      %v1129 = vsel %vm1124, %v1094, 0
      %v1132 = vsel %vm1124, %v1095, 0
      %v1135 = vsel %vm1124, %v1096, 0
      %v1138 = vsel %vm1124, %v1097, 0
      %v1141 = vsel %vm1124, %v1098, 0
      %v1144 = vsel %vm1124, %v1099, 0
      %v1147 = vsel %vm1124, %v1100, 0
      %v1150 = vsel %vm1124, %v1101, 0
      %v1153 = vsel %vm1124, %v1102, 0
      %v1156 = vsel %vm1124, %v1103, 0
      %v1159 = vsel %vm1124, %v1104, 0
      %v1162 = vsel %vm1124, %v1105, 0
      %v1165 = vsel %vm1124, %v1106, 0
      %v1168 = vsel %vm1124, %v1107, 0
      %v1171 = vsel %vm1124, %v1108, 0
      %1173 = vmatprep.subr.bf16.mxu0 0
      %1174 = vmatpush1.bf16.msra.mxu0 %v1122
      %1175 = vmatprep.subr.bf16.mxu0 0
      %1176 = vmatpush1.bf16.msra.mxu0 0
      %1177 = vmatprep.subr.bf16.mxu0 0
      %1178 = vmatpush1.bf16.msra.mxu0 0
      %1179 = vmatprep.subr.bf16.mxu0 0
      %1180 = vmatpush1.bf16.msra.mxu0 0
      %1181 = vmatprep.subr.bf16.mxu0 0
      %1182 = vmatpush1.bf16.msra.mxu0 0
      %1183 = vmatprep.subr.bf16.mxu0 0
      %1184 = vmatpush1.bf16.msra.mxu0 0
      %1185 = vmatprep.subr.bf16.mxu0 0
      %1186 = vmatpush1.bf16.msra.mxu0 0
      %1187 = vmatprep.subr.bf16.mxu0 0
      %1188 = vmatpush1.bf16.msra.mxu0 0
      %1189 = vmatprep.subr.bf16.mxu0 0
      %1190 = vmatpush1.bf16.msra.mxu0 0
      %1191 = vmatprep.subr.bf16.mxu0 0
      %1192 = vmatpush1.bf16.msra.mxu0 0
      %1193 = vmatprep.subr.bf16.mxu0 0
      %1194 = vmatpush1.bf16.msra.mxu0 0
      %1195 = vmatprep.subr.bf16.mxu0 0
      %1196 = vmatpush1.bf16.msra.mxu0 0
      %1197 = vmatprep.subr.bf16.mxu0 0
      %1198 = vmatpush1.bf16.msra.mxu0 0
      %1199 = vmatprep.subr.bf16.mxu0 0
      %1200 = vmatpush1.bf16.msra.mxu0 0
      %1201 = vmatprep.subr.bf16.mxu0 0
      %1202 = vmatpush1.bf16.msra.mxu0 0
      %1203 = vmatprep.subr.bf16.mxu0 0
      %1204 = vmatpush1.bf16.msra.mxu0 0
      %1205 = vmatprep.mubr.bf16.mxu0 0
      %1206 = vmatmul.mubr.bf16.gmra.mrb[0].mxu0 %v1126
      %v1207 = vpop.f32.mrb[0].mxu0
      %v1208 = vadd.f32 %v1116, %v1207
      %v1209 = vpop.f32.mrb[0].mxu0
      %v1210 = vpop.f32.mrb[0].mxu0
      %v1211 = vadd.f32 %v1116, %v1210
      %v1212 = vpop.f32.mrb[0].mxu0
      %1213 = vmatprep.mubr.bf16.mxu0 0
      %1214 = vmatmul.mubr.bf16.gmra.mrb[0].mxu0 %v1129
      %v1215 = vpop.f32.mrb[0].mxu0
      %v1216 = vadd.f32 %v1116, %v1215
      %v1217 = vpop.f32.mrb[0].mxu0
      %v1218 = vpop.f32.mrb[0].mxu0
      %v1219 = vadd.f32 %v1116, %v1218
      %v1220 = vpop.f32.mrb[0].mxu0
      %1221 = vmatprep.mubr.bf16.mxu0 0
      %1222 = vmatmul.mubr.bf16.gmra.mrb[0].mxu0 %v1132
      %v1223 = vpop.f32.mrb[0].mxu0
      %v1224 = vadd.f32 %v1116, %v1223
      %v1225 = vpop.f32.mrb[0].mxu0
      %v1226 = vpop.f32.mrb[0].mxu0
      %v1227 = vadd.f32 %v1116, %v1226
      %v1228 = vpop.f32.mrb[0].mxu0
      %1229 = vmatprep.mubr.bf16.mxu0 0
      %1230 = vmatmul.mubr.bf16.gmra.mrb[0].mxu0 %v1135
      %v1231 = vpop.f32.mrb[0].mxu0
      %v1232 = vadd.f32 %v1116, %v1231
      %v1233 = vpop.f32.mrb[0].mxu0
      %v1234 = vpop.f32.mrb[0].mxu0
      %v1235 = vadd.f32 %v1116, %v1234
      %v1236 = vpop.f32.mrb[0].mxu0
      %1237 = vmatprep.mubr.bf16.mxu0 0
      %1238 = vmatmul.mubr.bf16.gmra.mrb[0].mxu0 %v1138
      %v1239 = vpop.f32.mrb[0].mxu0
      %v1240 = vadd.f32 %v1116, %v1239
      %v1241 = vpop.f32.mrb[0].mxu0
      %v1242 = vpop.f32.mrb[0].mxu0
      %v1243 = vadd.f32 %v1116, %v1242
      %v1244 = vpop.f32.mrb[0].mxu0
      %1245 = vmatprep.mubr.bf16.mxu0 0
      %1246 = vmatmul.mubr.bf16.gmra.mrb[0].mxu0 %v1141
      %v1247 = vpop.f32.mrb[0].mxu0
      %v1248 = vadd.f32 %v1116, %v1247
      %v1249 = vpop.f32.mrb[0].mxu0
      %v1250 = vpop.f32.mrb[0].mxu0
      %v1251 = vadd.f32 %v1116, %v1250
      %v1252 = vpop.f32.mrb[0].mxu0
      %1253 = vmatprep.mubr.bf16.mxu0 0
      %1254 = vmatmul.mubr.bf16.gmra.mrb[0].mxu0 %v1144
      %v1255 = vpop.f32.mrb[0].mxu0
      %v1256 = vadd.f32 %v1116, %v1255
      %v1257 = vpop.f32.mrb[0].mxu0
      %v1258 = vpop.f32.mrb[0].mxu0
      %v1259 = vadd.f32 %v1116, %v1258
      %v1260 = vpop.f32.mrb[0].mxu0
      %1261 = vmatprep.mubr.bf16.mxu0 0
      %1262 = vmatmul.mubr.bf16.gmra.mrb[0].mxu0 %v1147
      %v1263 = vpop.f32.mrb[0].mxu0
      %v1264 = vadd.f32 %v1116, %v1263
      %v1265 = vpop.f32.mrb[0].mxu0
      %v1266 = vpop.f32.mrb[0].mxu0
      %v1267 = vadd.f32 %v1116, %v1266
      %v1268 = vpop.f32.mrb[0].mxu0
      %1269 = vmatprep.mubr.bf16.mxu0 0
      %1270 = vmatmul.mubr.bf16.gmra.mrb[0].mxu0 %v1150
      %v1271 = vpop.f32.mrb[0].mxu0
      %v1272 = vadd.f32 %v1116, %v1271
      %v1273 = vpop.f32.mrb[0].mxu0
      %v1274 = vpop.f32.mrb[0].mxu0
      %v1275 = vadd.f32 %v1116, %v1274
      %v1276 = vpop.f32.mrb[0].mxu0
      %1277 = vmatprep.mubr.bf16.mxu0 0
      %1278 = vmatmul.mubr.bf16.gmra.mrb[0].mxu0 %v1153
      %v1279 = vpop.f32.mrb[0].mxu0
      %v1280 = vadd.f32 %v1116, %v1279
      %v1281 = vpop.f32.mrb[0].mxu0
      %v1282 = vpop.f32.mrb[0].mxu0
      %v1283 = vadd.f32 %v1116, %v1282
      %v1284 = vpop.f32.mrb[0].mxu0
      %1285 = vmatprep.mubr.bf16.mxu0 0
      %1286 = vmatmul.mubr.bf16.gmra.mrb[0].mxu0 %v1156
      %v1287 = vpop.f32.mrb[0].mxu0
      %v1288 = vadd.f32 %v1116, %v1287
      %v1289 = vpop.f32.mrb[0].mxu0
      %v1290 = vpop.f32.mrb[0].mxu0
      %v1291 = vadd.f32 %v1116, %v1290
      %v1292 = vpop.f32.mrb[0].mxu0
      %1293 = vmatprep.mubr.bf16.mxu0 0
      %1294 = vmatmul.mubr.bf16.gmra.mrb[0].mxu0 %v1159
      %v1295 = vpop.f32.mrb[0].mxu0
      %v1296 = vadd.f32 %v1116, %v1295
      %v1297 = vpop.f32.mrb[0].mxu0
      %v1298 = vpop.f32.mrb[0].mxu0
      %v1299 = vadd.f32 %v1116, %v1298
      %v1300 = vpop.f32.mrb[0].mxu0
      %1301 = vmatprep.mubr.bf16.mxu0 0
      %1302 = vmatmul.mubr.bf16.gmra.mrb[0].mxu0 %v1162
      %v1303 = vpop.f32.mrb[0].mxu0
      %v1304 = vadd.f32 %v1116, %v1303
      %v1305 = vpop.f32.mrb[0].mxu0
      %v1306 = vpop.f32.mrb[0].mxu0
      %v1307 = vadd.f32 %v1116, %v1306
      %v1308 = vpop.f32.mrb[0].mxu0
      %1309 = vmatprep.mubr.bf16.mxu0 0
      %1310 = vmatmul.mubr.bf16.gmra.mrb[0].mxu0 %v1165
      %v1311 = vpop.f32.mrb[0].mxu0
      %v1312 = vadd.f32 %v1116, %v1311
      %v1313 = vpop.f32.mrb[0].mxu0
      %v1314 = vpop.f32.mrb[0].mxu0
      %v1315 = vadd.f32 %v1116, %v1314
      %v1316 = vpop.f32.mrb[0].mxu0
      %1317 = vmatprep.mubr.bf16.mxu0 0
      %1318 = vmatmul.mubr.bf16.gmra.mrb[0].mxu0 %v1168
      %v1319 = vpop.f32.mrb[0].mxu0
      %v1320 = vadd.f32 %v1116, %v1319
      %v1321 = vpop.f32.mrb[0].mxu0
      %v1322 = vpop.f32.mrb[0].mxu0
      %v1323 = vadd.f32 %v1116, %v1322
      %v1324 = vpop.f32.mrb[0].mxu0
      %1325 = vmatprep.mubr.bf16.mxu0 0
      %1326 = vmatmul.mubr.bf16.gmra.mrb[0].mxu0 %v1171
      %v1327 = vpop.f32.mrb[0].mxu0
      %v1328 = vadd.f32 %v1116, %v1327
      %v1329 = vpop.f32.mrb[0].mxu0
      %v1330 = vpop.f32.mrb[0].mxu0
      %v1331 = vadd.f32 %v1116, %v1330
      %v1332 = vpop.f32.mrb[0].mxu0
      %1333 = vdwg.mxu0
      %v1334 = vmax.f32 %v1208, 0.0
      %v1335 = vmax.f32 %v1211, 0.0
      %v1336 = vmax.f32 %v1216, 0.0
      %v1337 = vmax.f32 %v1219, 0.0
      %v1338 = vmax.f32 %v1224, 0.0
      %v1339 = vmax.f32 %v1227, 0.0
      %v1340 = vmax.f32 %v1232, 0.0
      %v1341 = vmax.f32 %v1235, 0.0
      %v1342 = vmax.f32 %v1240, 0.0
      %v1343 = vmax.f32 %v1243, 0.0
      %v1344 = vmax.f32 %v1248, 0.0
      %v1345 = vmax.f32 %v1251, 0.0
      %v1346 = vmax.f32 %v1256, 0.0
      %v1347 = vmax.f32 %v1259, 0.0
      %v1348 = vmax.f32 %v1264, 0.0
      %v1349 = vmax.f32 %v1267, 0.0
      %v1350 = vmax.f32 %v1272, 0.0
      %v1351 = vmax.f32 %v1275, 0.0
      %v1352 = vmax.f32 %v1280, 0.0
      %v1353 = vmax.f32 %v1283, 0.0
      %v1354 = vmax.f32 %v1288, 0.0
      %v1355 = vmax.f32 %v1291, 0.0
      %v1356 = vmax.f32 %v1296, 0.0
      %v1357 = vmax.f32 %v1299, 0.0
      %v1358 = vmax.f32 %v1304, 0.0
      %v1359 = vmax.f32 %v1307, 0.0
      %v1360 = vmax.f32 %v1312, 0.0
      %v1361 = vmax.f32 %v1315, 0.0
      %v1362 = vmax.f32 %v1320, 0.0
      %v1363 = vmax.f32 %v1323, 0.0
      %v1364 = vmax.f32 %v1328, 0.0
      %v1365 = vmax.f32 %v1331, 0.0
      %v1366 = vpack.c.bf16 %v1335, %v1334
      %v1367 = vpack.c.bf16 %v1337, %v1336
      %v1368 = vpack.c.bf16 %v1339, %v1338
      %v1369 = vpack.c.bf16 %v1341, %v1340
      %v1370 = vpack.c.bf16 %v1343, %v1342
      %v1371 = vpack.c.bf16 %v1345, %v1344
      %v1372 = vpack.c.bf16 %v1347, %v1346
      %v1373 = vpack.c.bf16 %v1349, %v1348
      %v1374 = vpack.c.bf16 %v1351, %v1350
      %v1375 = vpack.c.bf16 %v1353, %v1352
      %v1376 = vpack.c.bf16 %v1355, %v1354
      %v1377 = vpack.c.bf16 %v1357, %v1356
      %v1378 = vpack.c.bf16 %v1359, %v1358
      %v1379 = vpack.c.bf16 %v1361, %v1360
      %v1380 = vpack.c.bf16 %v1363, %v1362
      %v1381 = vpack.c.bf16 %v1365, %v1364
      %v1382 = vld [vmem:[%s7] sm:$0xf]
      %v1383 = vld [vmem:[%s7 + $0x4] sm:$0xf]
      %v1384 = vld [vmem:[%s8] sm:$0x1]
      %v1386 = vlaneseq
      %v1387 = vshrl.u32 %v1386, 7
      %v1388 = vsub.s32 0, %v1387
      %v1389 = vrot.slane %v1384, %v1388
      %v1393 = vunpack.c.l.b16 %v1382
      %v1394 = vunpack.c.l.b16 %v1383
      %v1395 = vpack.c.b16 %v1394, %v1393
      %v1398 = vsel %vm1124, %v1366, 0
      %v1401 = vsel %vm1124, %v1367, 0
      %v1404 = vsel %vm1124, %v1368, 0
      %v1407 = vsel %vm1124, %v1369, 0
      %v1410 = vsel %vm1124, %v1370, 0
      %v1413 = vsel %vm1124, %v1371, 0
      %v1416 = vsel %vm1124, %v1372, 0
      %v1419 = vsel %vm1124, %v1373, 0
      %v1422 = vsel %vm1124, %v1374, 0
      %v1425 = vsel %vm1124, %v1375, 0
      %v1428 = vsel %vm1124, %v1376, 0
      %v1431 = vsel %vm1124, %v1377, 0
      %v1434 = vsel %vm1124, %v1378, 0
      %v1437 = vsel %vm1124, %v1379, 0
      %v1440 = vsel %vm1124, %v1380, 0
      %v1443 = vsel %vm1124, %v1381, 0
      %1445 = vmatprep.subr.bf16.mxu0 0
      %1446 = vmatpush1.bf16.msra.mxu0 %v1395
      %1447 = vmatprep.subr.bf16.mxu0 0
      %1448 = vmatpush1.bf16.msra.mxu0 0
      %1449 = vmatprep.subr.bf16.mxu0 0
      %1450 = vmatpush1.bf16.msra.mxu0 0
      %1451 = vmatprep.subr.bf16.mxu0 0
      %1452 = vmatpush1.bf16.msra.mxu0 0
      %1453 = vmatprep.subr.bf16.mxu0 0
      %1454 = vmatpush1.bf16.msra.mxu0 0
      %1455 = vmatprep.subr.bf16.mxu0 0
      %1456 = vmatpush1.bf16.msra.mxu0 0
      %1457 = vmatprep.subr.bf16.mxu0 0
      %1458 = vmatpush1.bf16.msra.mxu0 0
      %1459 = vmatprep.subr.bf16.mxu0 0
      %1460 = vmatpush1.bf16.msra.mxu0 0
      %1461 = vmatprep.subr.bf16.mxu0 0
      %1462 = vmatpush1.bf16.msra.mxu0 0
      %1463 = vmatprep.subr.bf16.mxu0 0
      %1464 = vmatpush1.bf16.msra.mxu0 0
      %1465 = vmatprep.subr.bf16.mxu0 0
      %1466 = vmatpush1.bf16.msra.mxu0 0
      %1467 = vmatprep.subr.bf16.mxu0 0
      %1468 = vmatpush1.bf16.msra.mxu0 0
      %1469 = vmatprep.subr.bf16.mxu0 0
      %1470 = vmatpush1.bf16.msra.mxu0 0
      %1471 = vmatprep.subr.bf16.mxu0 0
      %1472 = vmatpush1.bf16.msra.mxu0 0
      %1473 = vmatprep.subr.bf16.mxu0 0
      %1474 = vmatpush1.bf16.msra.mxu0 0
      %1475 = vmatprep.subr.bf16.mxu0 0
      %1476 = vmatpush1.bf16.msra.mxu0 0
      %1477 = vmatprep.mubr.bf16.mxu0 0
      %1478 = vmatmul.mubr.bf16.gmra.mrb[0].mxu0 %v1398
      %v1479 = vpop.f32.mrb[0].mxu0
      %v1480 = vadd.f32 %v1389, %v1479
      %v1481 = vpop.f32.mrb[0].mxu0
      %v1482 = vpop.f32.mrb[0].mxu0
      %v1483 = vadd.f32 %v1389, %v1482
      %v1484 = vpop.f32.mrb[0].mxu0
      %1485 = vmatprep.mubr.bf16.mxu0 0
      %1486 = vmatmul.mubr.bf16.gmra.mrb[0].mxu0 %v1401
      %v1487 = vpop.f32.mrb[0].mxu0
      %v1488 = vadd.f32 %v1389, %v1487
      %v1489 = vpop.f32.mrb[0].mxu0
      %v1490 = vpop.f32.mrb[0].mxu0
      %v1491 = vadd.f32 %v1389, %v1490
      %v1492 = vpop.f32.mrb[0].mxu0
      %1493 = vmatprep.mubr.bf16.mxu0 0
      %1494 = vmatmul.mubr.bf16.gmra.mrb[0].mxu0 %v1404
      %v1495 = vpop.f32.mrb[0].mxu0
      %v1496 = vadd.f32 %v1389, %v1495
      %v1497 = vpop.f32.mrb[0].mxu0
      %v1498 = vpop.f32.mrb[0].mxu0
      %v1499 = vadd.f32 %v1389, %v1498
      %v1500 = vpop.f32.mrb[0].mxu0
      %1501 = vmatprep.mubr.bf16.mxu0 0
      %1502 = vmatmul.mubr.bf16.gmra.mrb[0].mxu0 %v1407
      %v1503 = vpop.f32.mrb[0].mxu0
      %v1504 = vadd.f32 %v1389, %v1503
      %v1505 = vpop.f32.mrb[0].mxu0
      %v1506 = vpop.f32.mrb[0].mxu0
      %v1507 = vadd.f32 %v1389, %v1506
      %v1508 = vpop.f32.mrb[0].mxu0
      %1509 = vmatprep.mubr.bf16.mxu0 0
      %1510 = vmatmul.mubr.bf16.gmra.mrb[0].mxu0 %v1410
      %v1511 = vpop.f32.mrb[0].mxu0
      %v1512 = vadd.f32 %v1389, %v1511
      %v1513 = vpop.f32.mrb[0].mxu0
      %v1514 = vpop.f32.mrb[0].mxu0
      %v1515 = vadd.f32 %v1389, %v1514
      %v1516 = vpop.f32.mrb[0].mxu0
      %1517 = vmatprep.mubr.bf16.mxu0 0
      %1518 = vmatmul.mubr.bf16.gmra.mrb[0].mxu0 %v1413
      %v1519 = vpop.f32.mrb[0].mxu0
      %v1520 = vadd.f32 %v1389, %v1519
      %v1521 = vpop.f32.mrb[0].mxu0
      %v1522 = vpop.f32.mrb[0].mxu0
      %v1523 = vadd.f32 %v1389, %v1522
      %v1524 = vpop.f32.mrb[0].mxu0
      %1525 = vmatprep.mubr.bf16.mxu0 0
      %1526 = vmatmul.mubr.bf16.gmra.mrb[0].mxu0 %v1416
      %v1527 = vpop.f32.mrb[0].mxu0
      %v1528 = vadd.f32 %v1389, %v1527
      %v1529 = vpop.f32.mrb[0].mxu0
      %v1530 = vpop.f32.mrb[0].mxu0
      %v1531 = vadd.f32 %v1389, %v1530
      %v1532 = vpop.f32.mrb[0].mxu0
      %1533 = vmatprep.mubr.bf16.mxu0 0
      %1534 = vmatmul.mubr.bf16.gmra.mrb[0].mxu0 %v1419
      %v1535 = vpop.f32.mrb[0].mxu0
      %v1536 = vadd.f32 %v1389, %v1535
      %v1537 = vpop.f32.mrb[0].mxu0
      %v1538 = vpop.f32.mrb[0].mxu0
      %v1539 = vadd.f32 %v1389, %v1538
      %v1540 = vpop.f32.mrb[0].mxu0
      %1541 = vmatprep.mubr.bf16.mxu0 0
      %1542 = vmatmul.mubr.bf16.gmra.mrb[0].mxu0 %v1422
      %v1543 = vpop.f32.mrb[0].mxu0
      %v1544 = vadd.f32 %v1389, %v1543
      %v1545 = vpop.f32.mrb[0].mxu0
      %v1546 = vpop.f32.mrb[0].mxu0
      %v1547 = vadd.f32 %v1389, %v1546
      %v1548 = vpop.f32.mrb[0].mxu0
      %1549 = vmatprep.mubr.bf16.mxu0 0
      %1550 = vmatmul.mubr.bf16.gmra.mrb[0].mxu0 %v1425
      %v1551 = vpop.f32.mrb[0].mxu0
      %v1552 = vadd.f32 %v1389, %v1551
      %v1553 = vpop.f32.mrb[0].mxu0
      %v1554 = vpop.f32.mrb[0].mxu0
      %v1555 = vadd.f32 %v1389, %v1554
      %v1556 = vpop.f32.mrb[0].mxu0
      %1557 = vmatprep.mubr.bf16.mxu0 0
      %1558 = vmatmul.mubr.bf16.gmra.mrb[0].mxu0 %v1428
      %v1559 = vpop.f32.mrb[0].mxu0
      %v1560 = vadd.f32 %v1389, %v1559
      %v1561 = vpop.f32.mrb[0].mxu0
      %v1562 = vpop.f32.mrb[0].mxu0
      %v1563 = vadd.f32 %v1389, %v1562
      %v1564 = vpop.f32.mrb[0].mxu0
      %1565 = vmatprep.mubr.bf16.mxu0 0
      %1566 = vmatmul.mubr.bf16.gmra.mrb[0].mxu0 %v1431
      %v1567 = vpop.f32.mrb[0].mxu0
      %v1568 = vadd.f32 %v1389, %v1567
      %v1569 = vpop.f32.mrb[0].mxu0
      %v1570 = vpop.f32.mrb[0].mxu0
      %v1571 = vadd.f32 %v1389, %v1570
      %v1572 = vpop.f32.mrb[0].mxu0
      %1573 = vmatprep.mubr.bf16.mxu0 0
      %1574 = vmatmul.mubr.bf16.gmra.mrb[0].mxu0 %v1434
      %v1575 = vpop.f32.mrb[0].mxu0
      %v1576 = vadd.f32 %v1389, %v1575
      %v1577 = vpop.f32.mrb[0].mxu0
      %v1578 = vpop.f32.mrb[0].mxu0
      %v1579 = vadd.f32 %v1389, %v1578
      %v1580 = vpop.f32.mrb[0].mxu0
      %1581 = vmatprep.mubr.bf16.mxu0 0
      %1582 = vmatmul.mubr.bf16.gmra.mrb[0].mxu0 %v1437
      %v1583 = vpop.f32.mrb[0].mxu0
      %v1584 = vadd.f32 %v1389, %v1583
      %v1585 = vpop.f32.mrb[0].mxu0
      %v1586 = vpop.f32.mrb[0].mxu0
      %v1587 = vadd.f32 %v1389, %v1586
      %v1588 = vpop.f32.mrb[0].mxu0
      %1589 = vmatprep.mubr.bf16.mxu0 0
      %1590 = vmatmul.mubr.bf16.gmra.mrb[0].mxu0 %v1440
      %v1591 = vpop.f32.mrb[0].mxu0
      %v1592 = vadd.f32 %v1389, %v1591
      %v1593 = vpop.f32.mrb[0].mxu0
      %v1594 = vpop.f32.mrb[0].mxu0
      %v1595 = vadd.f32 %v1389, %v1594
      %v1596 = vpop.f32.mrb[0].mxu0
      %1597 = vmatprep.mubr.bf16.mxu0 0
      %1598 = vmatmul.mubr.bf16.gmra.mrb[0].mxu0 %v1443
      %v1599 = vpop.f32.mrb[0].mxu0
      %v1600 = vadd.f32 %v1389, %v1599
      %v1601 = vpop.f32.mrb[0].mxu0
      %v1602 = vpop.f32.mrb[0].mxu0
      %v1603 = vadd.f32 %v1389, %v1602
      %v1604 = vpop.f32.mrb[0].mxu0
      %1605 = vdwg.mxu0
      %v1606 = vmax.f32 %v1480, 0.0
      %v1607 = vmax.f32 %v1483, 0.0
      %v1608 = vmax.f32 %v1488, 0.0
      %v1609 = vmax.f32 %v1491, 0.0
      %v1610 = vmax.f32 %v1496, 0.0
      %v1611 = vmax.f32 %v1499, 0.0
      %v1612 = vmax.f32 %v1504, 0.0
      %v1613 = vmax.f32 %v1507, 0.0
      %v1614 = vmax.f32 %v1512, 0.0
      %v1615 = vmax.f32 %v1515, 0.0
      %v1616 = vmax.f32 %v1520, 0.0
      %v1617 = vmax.f32 %v1523, 0.0
      %v1618 = vmax.f32 %v1528, 0.0
      %v1619 = vmax.f32 %v1531, 0.0
      %v1620 = vmax.f32 %v1536, 0.0
      %v1621 = vmax.f32 %v1539, 0.0
      %v1622 = vmax.f32 %v1544, 0.0
      %v1623 = vmax.f32 %v1547, 0.0
      %v1624 = vmax.f32 %v1552, 0.0
      %v1625 = vmax.f32 %v1555, 0.0
      %v1626 = vmax.f32 %v1560, 0.0
      %v1627 = vmax.f32 %v1563, 0.0
      %v1628 = vmax.f32 %v1568, 0.0
      %v1629 = vmax.f32 %v1571, 0.0
      %v1630 = vmax.f32 %v1576, 0.0
      %v1631 = vmax.f32 %v1579, 0.0
      %v1632 = vmax.f32 %v1584, 0.0
      %v1633 = vmax.f32 %v1587, 0.0
      %v1634 = vmax.f32 %v1592, 0.0
      %v1635 = vmax.f32 %v1595, 0.0
      %v1636 = vmax.f32 %v1600, 0.0
      %v1637 = vmax.f32 %v1603, 0.0
      %v1638 = vpack.c.bf16 %v1607, %v1606
      %v1639 = vpack.c.bf16 %v1609, %v1608
      %v1640 = vpack.c.bf16 %v1611, %v1610
      %v1641 = vpack.c.bf16 %v1613, %v1612
      %v1642 = vpack.c.bf16 %v1615, %v1614
      %v1643 = vpack.c.bf16 %v1617, %v1616
      %v1644 = vpack.c.bf16 %v1619, %v1618
      %v1645 = vpack.c.bf16 %v1621, %v1620
      %v1646 = vpack.c.bf16 %v1623, %v1622
      %v1647 = vpack.c.bf16 %v1625, %v1624
      %v1648 = vpack.c.bf16 %v1627, %v1626
      %v1649 = vpack.c.bf16 %v1629, %v1628
      %v1650 = vpack.c.bf16 %v1631, %v1630
      %v1651 = vpack.c.bf16 %v1633, %v1632
      %v1652 = vpack.c.bf16 %v1635, %v1634
      %v1653 = vpack.c.bf16 %v1637, %v1636
      %v1654 = vld [vmem:[%s9] sm:$0xf]
      %v1655 = vld [vmem:[%s9 + $0x4] sm:$0xf]
      %v1656 = vld [vmem:[%s9 + $0x8] sm:$0xf]
      %v1657 = vld [vmem:[%s9 + $0xc] sm:$0xf]
      %v1658 = vld [vmem:[%s9 + $0x10] sm:$0xf]
      %v1659 = vld [vmem:[%s10] sm:$0x1]
      %v1661 = vlaneseq
      %v1662 = vshrl.u32 %v1661, 7
      %v1663 = vsub.s32 0, %v1662
      %v1664 = vrot.slane %v1659, %v1663
      %v1671 = vunpack.c.l.b16 %v1654
      %v1672 = vunpack.c.l.b16 %v1655
      %v1673 = vunpack.c.l.b16 %v1656
      %v1674 = vunpack.c.l.b16 %v1657
      %v1675 = vunpack.c.l.b16 %v1658
      %v1676 = vpack.c.b16 %v1672, %v1671
      %v1677 = vpack.c.b16 %v1674, %v1673
      %v1678 = vpack.c.b16 %v1675, %v1675
      %v1682 = vsel %vm847, %v1638, 0
      %v1685 = vsel %vm847, %v1639, 0
      %v1688 = vsel %vm847, %v1640, 0
      %v1691 = vsel %vm847, %v1641, 0
      %v1694 = vsel %vm847, %v1642, 0
      %v1697 = vsel %vm847, %v1643, 0
      %v1700 = vsel %vm847, %v1644, 0
      %v1703 = vsel %vm847, %v1645, 0
      %v1706 = vsel %vm847, %v1646, 0
      %v1709 = vsel %vm847, %v1647, 0
      %v1712 = vsel %vm847, %v1648, 0
      %v1715 = vsel %vm847, %v1649, 0
      %v1718 = vsel %vm847, %v1650, 0
      %v1721 = vsel %vm847, %v1651, 0
      %v1724 = vsel %vm847, %v1652, 0
      %v1727 = vsel %vm847, %v1653, 0
      %v1730 = vsel %vm896, %v1678, 0
      %1732 = vmatprep.subr.bf16.mxu0 0
      %1733 = vmatpush1.bf16.msra.mxu0 %v1676
      %1734 = vmatprep.subr.bf16.mxu0 0
      %1735 = vmatpush1.bf16.msra.mxu0 %v1677
      %1736 = vmatprep.subr.bf16.mxu0 0
      %1737 = vmatpush1.bf16.msra.mxu0 %v1730
      %1738 = vmatprep.subr.bf16.mxu0 0
      %1739 = vmatpush1.bf16.msra.mxu0 0
      %1740 = vmatprep.subr.bf16.mxu0 0
      %1741 = vmatpush1.bf16.msra.mxu0 0
      %1742 = vmatprep.subr.bf16.mxu0 0
      %1743 = vmatpush1.bf16.msra.mxu0 0
      %1744 = vmatprep.subr.bf16.mxu0 0
      %1745 = vmatpush1.bf16.msra.mxu0 0
      %1746 = vmatprep.subr.bf16.mxu0 0
      %1747 = vmatpush1.bf16.msra.mxu0 0
      %1748 = vmatprep.subr.bf16.mxu0 0
      %1749 = vmatpush1.bf16.msra.mxu0 0
      %1750 = vmatprep.subr.bf16.mxu0 0
      %1751 = vmatpush1.bf16.msra.mxu0 0
      %1752 = vmatprep.subr.bf16.mxu0 0
      %1753 = vmatpush1.bf16.msra.mxu0 0
      %1754 = vmatprep.subr.bf16.mxu0 0
      %1755 = vmatpush1.bf16.msra.mxu0 0
      %1756 = vmatprep.subr.bf16.mxu0 0
      %1757 = vmatpush1.bf16.msra.mxu0 0
      %1758 = vmatprep.subr.bf16.mxu0 0
      %1759 = vmatpush1.bf16.msra.mxu0 0
      %1760 = vmatprep.subr.bf16.mxu0 0
      %1761 = vmatpush1.bf16.msra.mxu0 0
      %1762 = vmatprep.subr.bf16.mxu0 0
      %1763 = vmatpush1.bf16.msra.mxu0 0
      %1764 = vmatprep.mubr.bf16.mxu0 0
      %1765 = vmatmul.mubr.bf16.gmra.mrb[0].mxu0 %v1682
      %v1766 = vpop.f32.mrb[0].mxu0
      %v1767 = vadd.f32 %v1664, %v1766
      %v1768 = vpop.f32.mrb[0].mxu0
      %v1769 = vpop.f32.mrb[0].mxu0
      %v1770 = vadd.f32 %v1664, %v1769
      %v1771 = vpop.f32.mrb[0].mxu0
      %1772 = vmatprep.mubr.bf16.mxu0 0
      %1773 = vmatmul.mubr.bf16.gmra.mrb[0].mxu0 %v1685
      %v1774 = vpop.f32.mrb[0].mxu0
      %v1775 = vadd.f32 %v1664, %v1774
      %v1776 = vpop.f32.mrb[0].mxu0
      %v1777 = vpop.f32.mrb[0].mxu0
      %v1778 = vadd.f32 %v1664, %v1777
      %v1779 = vpop.f32.mrb[0].mxu0
      %1780 = vmatprep.mubr.bf16.mxu0 0
      %1781 = vmatmul.mubr.bf16.gmra.mrb[0].mxu0 %v1688
      %v1782 = vpop.f32.mrb[0].mxu0
      %v1783 = vadd.f32 %v1664, %v1782
      %v1784 = vpop.f32.mrb[0].mxu0
      %v1785 = vpop.f32.mrb[0].mxu0
      %v1786 = vadd.f32 %v1664, %v1785
      %v1787 = vpop.f32.mrb[0].mxu0
      %1788 = vmatprep.mubr.bf16.mxu0 0
      %1789 = vmatmul.mubr.bf16.gmra.mrb[0].mxu0 %v1691
      %v1790 = vpop.f32.mrb[0].mxu0
      %v1791 = vadd.f32 %v1664, %v1790
      %v1792 = vpop.f32.mrb[0].mxu0
      %v1793 = vpop.f32.mrb[0].mxu0
      %v1794 = vadd.f32 %v1664, %v1793
      %v1795 = vpop.f32.mrb[0].mxu0
      %1796 = vmatprep.mubr.bf16.mxu0 0
      %1797 = vmatmul.mubr.bf16.gmra.mrb[0].mxu0 %v1694
      %v1798 = vpop.f32.mrb[0].mxu0
      %v1799 = vadd.f32 %v1664, %v1798
      %v1800 = vpop.f32.mrb[0].mxu0
      %v1801 = vpop.f32.mrb[0].mxu0
      %v1802 = vadd.f32 %v1664, %v1801
      %v1803 = vpop.f32.mrb[0].mxu0
      %1804 = vmatprep.mubr.bf16.mxu0 0
      %1805 = vmatmul.mubr.bf16.gmra.mrb[0].mxu0 %v1697
      %v1806 = vpop.f32.mrb[0].mxu0
      %v1807 = vadd.f32 %v1664, %v1806
      %v1808 = vpop.f32.mrb[0].mxu0
      %v1809 = vpop.f32.mrb[0].mxu0
      %v1810 = vadd.f32 %v1664, %v1809
      %v1811 = vpop.f32.mrb[0].mxu0
      %1812 = vmatprep.mubr.bf16.mxu0 0
      %1813 = vmatmul.mubr.bf16.gmra.mrb[0].mxu0 %v1700
      %v1814 = vpop.f32.mrb[0].mxu0
      %v1815 = vadd.f32 %v1664, %v1814
      %v1816 = vpop.f32.mrb[0].mxu0
      %v1817 = vpop.f32.mrb[0].mxu0
      %v1818 = vadd.f32 %v1664, %v1817
      %v1819 = vpop.f32.mrb[0].mxu0
      %1820 = vmatprep.mubr.bf16.mxu0 0
      %1821 = vmatmul.mubr.bf16.gmra.mrb[0].mxu0 %v1703
      %v1822 = vpop.f32.mrb[0].mxu0
      %v1823 = vadd.f32 %v1664, %v1822
      %v1824 = vpop.f32.mrb[0].mxu0
      %v1825 = vpop.f32.mrb[0].mxu0
      %v1826 = vadd.f32 %v1664, %v1825
      %v1827 = vpop.f32.mrb[0].mxu0
      %1828 = vmatprep.mubr.bf16.mxu0 0
      %1829 = vmatmul.mubr.bf16.gmra.mrb[0].mxu0 %v1706
      %v1830 = vpop.f32.mrb[0].mxu0
      %v1831 = vadd.f32 %v1664, %v1830
      %v1832 = vpop.f32.mrb[0].mxu0
      %v1833 = vpop.f32.mrb[0].mxu0
      %v1834 = vadd.f32 %v1664, %v1833
      %v1835 = vpop.f32.mrb[0].mxu0
      %1836 = vmatprep.mubr.bf16.mxu0 0
      %1837 = vmatmul.mubr.bf16.gmra.mrb[0].mxu0 %v1709
      %v1838 = vpop.f32.mrb[0].mxu0
      %v1839 = vadd.f32 %v1664, %v1838
      %v1840 = vpop.f32.mrb[0].mxu0
      %v1841 = vpop.f32.mrb[0].mxu0
      %v1842 = vadd.f32 %v1664, %v1841
      %v1843 = vpop.f32.mrb[0].mxu0
      %1844 = vmatprep.mubr.bf16.mxu0 0
      %1845 = vmatmul.mubr.bf16.gmra.mrb[0].mxu0 %v1712
      %v1846 = vpop.f32.mrb[0].mxu0
      %v1847 = vadd.f32 %v1664, %v1846
      %v1848 = vpop.f32.mrb[0].mxu0
      %v1849 = vpop.f32.mrb[0].mxu0
      %v1850 = vadd.f32 %v1664, %v1849
      %v1851 = vpop.f32.mrb[0].mxu0
      %1852 = vmatprep.mubr.bf16.mxu0 0
      %1853 = vmatmul.mubr.bf16.gmra.mrb[0].mxu0 %v1715
      %v1854 = vpop.f32.mrb[0].mxu0
      %v1855 = vadd.f32 %v1664, %v1854
      %v1856 = vpop.f32.mrb[0].mxu0
      %v1857 = vpop.f32.mrb[0].mxu0
      %v1858 = vadd.f32 %v1664, %v1857
      %v1859 = vpop.f32.mrb[0].mxu0
      %1860 = vmatprep.mubr.bf16.mxu0 0
      %1861 = vmatmul.mubr.bf16.gmra.mrb[0].mxu0 %v1718
      %v1862 = vpop.f32.mrb[0].mxu0
      %v1863 = vadd.f32 %v1664, %v1862
      %v1864 = vpop.f32.mrb[0].mxu0
      %v1865 = vpop.f32.mrb[0].mxu0
      %v1866 = vadd.f32 %v1664, %v1865
      %v1867 = vpop.f32.mrb[0].mxu0
      %1868 = vmatprep.mubr.bf16.mxu0 0
      %1869 = vmatmul.mubr.bf16.gmra.mrb[0].mxu0 %v1721
      %v1870 = vpop.f32.mrb[0].mxu0
      %v1871 = vadd.f32 %v1664, %v1870
      %v1872 = vpop.f32.mrb[0].mxu0
      %v1873 = vpop.f32.mrb[0].mxu0
      %v1874 = vadd.f32 %v1664, %v1873
      %v1875 = vpop.f32.mrb[0].mxu0
      %1876 = vmatprep.mubr.bf16.mxu0 0
      %1877 = vmatmul.mubr.bf16.gmra.mrb[0].mxu0 %v1724
      %v1878 = vpop.f32.mrb[0].mxu0
      %v1879 = vadd.f32 %v1664, %v1878
      %v1880 = vpop.f32.mrb[0].mxu0
      %v1881 = vpop.f32.mrb[0].mxu0
      %v1882 = vadd.f32 %v1664, %v1881
      %v1883 = vpop.f32.mrb[0].mxu0
      %1884 = vmatprep.mubr.bf16.mxu0 0
      %1885 = vmatmul.mubr.bf16.gmra.mrb[0].mxu0 %v1727
      %v1886 = vpop.f32.mrb[0].mxu0
      %v1887 = vadd.f32 %v1664, %v1886
      %v1888 = vpop.f32.mrb[0].mxu0
      %v1889 = vpop.f32.mrb[0].mxu0
      %v1890 = vadd.f32 %v1664, %v1889
      %v1891 = vpop.f32.mrb[0].mxu0
      %1892 = vdwg.mxu0
      %1893 = vxpose.xlu0.b32.start [1/16] %v1767, 128
      %1894 = vxpose.xlu0.b32.cont [2/16] %v1770, 128
      %1895 = vxpose.xlu0.b32.cont [3/16] %v1775, 128
      %1896 = vxpose.xlu0.b32.cont [4/16] %v1778, 128
      %1897 = vxpose.xlu0.b32.cont [5/16] %v1783, 128
      %1898 = vxpose.xlu0.b32.cont [6/16] %v1786, 128
      %1899 = vxpose.xlu0.b32.cont [7/16] %v1791, 128
      %1900 = vxpose.xlu0.b32.cont [8/16] %v1794, 128
      %1901 = vxpose.xlu0.b32.cont [9/16] %v1799, 128
      %1902 = vxpose.xlu0.b32.cont [10/16] %v1802, 128
      %1903 = vxpose.xlu0.b32.cont [11/16] %v1807, 128
      %1904 = vxpose.xlu0.b32.cont [12/16] %v1810, 128
      %1905 = vxpose.xlu0.b32.cont [13/16] %v1815, 128
      %1906 = vxpose.xlu0.b32.cont [14/16] %v1818, 128
      %1907 = vxpose.xlu0.b32.cont [15/16] %v1823, 128
      %1908 = vxpose.xlu0.b32.end [16/16] %v1826, 128
      %v1909 = vpop.trf.xlu0
      %v1910 = vpop.trf.xlu0
      %v1911 = vpop.trf.xlu0
      %v1912 = vpop.trf.xlu0
      %v1913 = vpop.trf.xlu0
      %v1914 = vpop.trf.xlu0
      %v1915 = vpop.trf.xlu0
      %v1916 = vpop.trf.xlu0
      %v1917 = vpop.trf.xlu0
      %v1918 = vpop.trf.xlu0
      %v1919 = vpop.trf.xlu0
      %v1920 = vpop.trf.xlu0
      %v1921 = vpop.trf.xlu0
      %v1922 = vpop.trf.xlu0
      %v1923 = vpop.trf.xlu0
      %v1924 = vpop.trf.xlu0
      %1925 = vxpose.xlu0.b32.start [1/16] %v1831, 128
      %1926 = vxpose.xlu0.b32.cont [2/16] %v1834, 128
      %1927 = vxpose.xlu0.b32.cont [3/16] %v1839, 128
      %1928 = vxpose.xlu0.b32.cont [4/16] %v1842, 128
      %1929 = vxpose.xlu0.b32.cont [5/16] %v1847, 128
      %1930 = vxpose.xlu0.b32.cont [6/16] %v1850, 128
      %1931 = vxpose.xlu0.b32.cont [7/16] %v1855, 128
      %1932 = vxpose.xlu0.b32.cont [8/16] %v1858, 128
      %1933 = vxpose.xlu0.b32.cont [9/16] %v1863, 128
      %1934 = vxpose.xlu0.b32.cont [10/16] %v1866, 128
      %1935 = vxpose.xlu0.b32.cont [11/16] %v1871, 128
      %1936 = vxpose.xlu0.b32.cont [12/16] %v1874, 128
      %1937 = vxpose.xlu0.b32.cont [13/16] %v1879, 128
      %1938 = vxpose.xlu0.b32.cont [14/16] %v1882, 128
      %1939 = vxpose.xlu0.b32.cont [15/16] %v1887, 128
      %1940 = vxpose.xlu0.b32.end [16/16] %v1890, 128
      %v1941 = vpop.trf.xlu0
      %v1942 = vpop.trf.xlu0
      %v1943 = vpop.trf.xlu0
      %v1944 = vpop.trf.xlu0
      %v1945 = vpop.trf.xlu0
      %v1946 = vpop.trf.xlu0
      %v1947 = vpop.trf.xlu0
      %v1948 = vpop.trf.xlu0
      %v1949 = vpop.trf.xlu0
      %v1950 = vpop.trf.xlu0
      %v1951 = vpop.trf.xlu0
      %v1952 = vpop.trf.xlu0
      %v1953 = vpop.trf.xlu0
      %v1954 = vpop.trf.xlu0
      %v1955 = vpop.trf.xlu0
      %v1956 = vpop.trf.xlu0
      %1957 = vst [vmem:[%s424] sm:$0xff] %v1909
      %1958 = vst [vmem:[%s424 + $0x8] sm:$0xff] %v1941
      %1959 = vst [vmem:[%s424 + $0x10] sm:$0xff] %v1910
      %1960 = vst [vmem:[%s424 + $0x18] sm:$0xff] %v1942
      %1961 = vst [vmem:[%s424 + $0x20] sm:$0xff] %v1911
      %1962 = vst [vmem:[%s424 + $0x28] sm:$0xff] %v1943
      %1963 = vst [vmem:[%s424 + $0x30] sm:$0xff] %v1912
      %1964 = vst [vmem:[%s424 + $0x38] sm:$0xff] %v1944
      %1965 = vst [vmem:[%s424 + $0x40] sm:$0xff] %v1913
      %1966 = vst [vmem:[%s424 + $0x48] sm:$0xff] %v1945
      %1967 = vst [vmem:[%s424 + $0x50] sm:$0xff] %v1914
      %1968 = vst [vmem:[%s424 + $0x58] sm:$0xff] %v1946
      %1969 = vst [vmem:[%s424 + $0x60] sm:$0xff] %v1915
      %1970 = vst [vmem:[%s424 + $0x68] sm:$0xff] %v1947
      %1971 = vst [vmem:[%s424 + $0x70] sm:$0xff] %v1916
      %1972 = vst [vmem:[%s424 + $0x78] sm:$0xff] %v1948
      %s1973 = smul.u32 2, %s27
      %p1974 = scmp.lt.s32.totalorder %s26, 1
      %s1975 = scalar_select %p1974, %s26, 1
      %p1976 = scmp.lt.s32.totalorder %s1973, 1
      %s1977 = scalar_select %p1976, %s1973, 1
      %s1978 = smul.addr %s1975, 16
      %s1979 = sadd.s32 %s1977, %s1978
      %s1980 = smul.addr %s1979, 8
      %s1981 = scalar_lea.vmem %s11, %s1980
      // Predicated region
      $region65: #{featcae_forward.1} parent=63 // pred_check
        %p1982 = pneg %p292
      $region66: #{featcae_forward.1} parent=63 // pred_check_branch
        %1984 = sbr.rel (%p1982) target = $region68
      $region67: #{featcae_forward.1} parent=63 // pred_region
        %s1985 = smul.u32 2, %s27
      $region68: #{featcae_forward.1} parent=63 // pred_fallthru
        _
    $region64: #{featcae_forward.1} parent=5 // pred_fallthru
      _
    %p1986 = scmp.le.s32.totalorder 2, %s17
    // Predicated region
    $region69: #{featcae_forward.1} parent=5 // pred_check
      %p1987 = pneg %p1986
    $region70: #{featcae_forward.1} parent=5 // pred_check_branch
      %1989 = sbr.rel (%p1987) target = $region72
    $region71: #{featcae_forward.1} parent=5 // pred_region
      %s1990 = ssub.s32 %s17, 2
      // Predicated region
      $region73: #{featcae_forward.1} parent=71 // pred_check
        %p1991 = pneg %p298
      $region74: #{featcae_forward.1} parent=71 // pred_check_branch
        %1993 = sbr.rel (%p1991) target = $region76
      $region75: #{featcae_forward.1} parent=71 // pred_region
        %s1994 = smul.u32 2, %s29
        %p1995 = scmp.lt.s32.totalorder %s28, 1
        %s1996 = scalar_select %p1995, %s28, 1
        %p1997 = scmp.lt.s32.totalorder %s1994, 1
        %s1998 = scalar_select %p1997, %s1994, 1
        %s1999 = smul.addr %s1996, 16
        %s2000 = sadd.s32 %s1998, %s1999
        %s2001 = smul.addr %s2000, 8
        %s2002 = scalar_lea.vmem %s11, %s2001
      $region76: #{featcae_forward.1} parent=71 // pred_fallthru
        _
    $region72: #{featcae_forward.1} parent=5 // pred_fallthru
      _
  $region6: #{featcae_forward.1} parent=0 // loop_footer
    %s21 = sadd.s32 1, %s17
  $region7: #{featcae_forward.1} parent=0 // loop_footer_branch
    %16 = sbr.rel target = $region3
  $region8: #{featcae_forward.1} parent=0 // loop_exit
    _

</llo_original>
